<compile_context>
chip_gen: v7x
topology: tpu7x:2x2x1
jax: 0.10.0
libtpu: 0.0.40
codegen_flags: <defaults>
</compile_context>

<pallas_src>
import jax
import jax.numpy as jnp
from jax.experimental import pallas as pl
from jax.experimental.pallas import tpu as pltpu

# ----- hyperparameters (the `params` dict of the torch module) -----
IN_FEAT = 8
NHID = 32
OUT_FEAT = 1
N_EDGE_LABELS = 2
NLAYERS = 2
NEG_SLOPE = 0.01                         # F.leaky_relu default
NHID_BIG = (1 + N_EDGE_LABELS) * NHID    # fused root+conv output width = 96

# ----- batching geometry -----
NPB = 128                 # nodes per grid block (fills MXU M dim)
GPB = 16                  # graphs per grid block
NODES_PER_GRAPH = NPB // GPB   # 8


def rgnn_kernel(x_ref, adj_ref, pool_ref,
                w_emb_ref, b_emb_ref,
                w_big_ref, b_big_ref,
                w1_ref, b1_ref, w2_ref, b2_ref,
                out_ref):
    x = x_ref[0]          # (NPB, IN_FEAT)        f32
    adj = adj_ref[0]      # (NPB, L*NPB)          bf16, [A_0 | A_1] along lanes
    pool = pool_ref[0]    # (GPB, NPB)            f32

    # node embedding
    h = jnp.dot(x, w_emb_ref[...], preferred_element_type=jnp.float32) + b_emb_ref[...]

    # relational GNN layers (statically unrolled)
    for l in range(NLAYERS):
        # fused root + per-edge-label transform: (NPB, NHID) @ (NHID, 96)
        res = (jnp.dot(h, w_big_ref[l], preferred_element_type=jnp.float32)
               + b_big_ref[l])
        root = res[:, :NHID]                                       # (NPB, NHID)
        # stack the per-label messages along rows -> (L*NPB, NHID)
        msg_cat = jnp.concatenate(
            [res[:, (1 + e) * NHID:(2 + e) * NHID] for e in range(N_EDGE_LABELS)],
            axis=0)
        # fused adjacency aggregation: sum_e A_e @ msg_e  (bf16 MXU, f32 acc)
        agg = jnp.dot(adj, msg_cat.astype(jnp.bfloat16),
                      preferred_element_type=jnp.float32)          # (NPB, NHID)
        out = root + agg
        h = jnp.where(out > 0, out, NEG_SLOPE * out)                # leaky_relu

    # global_add_pool
    g = jnp.dot(pool, h, preferred_element_type=jnp.float32)        # (GPB, NHID)

    # readout MLP: Linear -> ReLU -> Linear(., 1)
    z = jnp.maximum(
        jnp.dot(g, w1_ref[...], preferred_element_type=jnp.float32) + b1_ref[...],
        0.0)
    # final 1-wide projection as VPU multiply + lane reduction (no MXU matmul)
    score = jnp.sum(z * w2_ref[...], axis=-1, keepdims=True) + b2_ref[...]
    out_ref[0] = score                                               # (GPB, 1)


def rgnn_forward(x, adj_cat, pool, fused):
    """x: (B, NPB, IN_FEAT) f32; adj_cat: (B, NPB, L*NPB) bf16; pool: (B, GPB, NPB) f32."""
    B = x.shape[0]

    def full_spec(arr):
        nd = arr.ndim
        return pl.BlockSpec(arr.shape, lambda b, nd=nd: (0,) * nd)

    in_specs = [
        pl.BlockSpec((1, NPB, IN_FEAT), lambda b: (b, 0, 0)),
        pl.BlockSpec((1, NPB, N_EDGE_LABELS * NPB), lambda b: (b, 0, 0)),
        pl.BlockSpec((1, GPB, NPB), lambda b: (b, 0, 0)),
        full_spec(fused["w_emb"]), full_spec(fused["b_emb"]),
        full_spec(fused["w_big"]), full_spec(fused["b_big"]),
        full_spec(fused["w1"]), full_spec(fused["b1"]),
        full_spec(fused["w2_row"]), full_spec(fused["b2"]),
    ]
    out = pl.pallas_call(
        rgnn_kernel,
        out_shape=jax.ShapeDtypeStruct((B, GPB, OUT_FEAT), jnp.float32),
        grid=(B,),
        in_specs=in_specs,
        out_specs=pl.BlockSpec((1, GPB, OUT_FEAT), lambda b: (b, 0, 0)),
        compiler_params=pltpu.CompilerParams(
            dimension_semantics=("parallel",)),
    )(x, adj_cat, pool,
      fused["w_emb"], fused["b_emb"],
      fused["w_big"], fused["b_big"],
      fused["w1"], fused["b1"], fused["w2_row"], fused["b2"])
    return out.reshape(B * GPB)          # h.squeeze(1) -> (G,)


# ---------------- parameter / input construction (glue, plain JAX) ----------


def init_params(key):
    ks = jax.random.split(key, 9)
    s = 0.1
    return {
        # torch Linear weight is (out,in); stored transposed (in,out) for x @ W
        "w_emb": s * jax.random.normal(ks[0], (IN_FEAT, NHID), jnp.float32),
        "b_emb": s * jax.random.normal(ks[1], (1, NHID), jnp.float32),
        "w_root": s * jax.random.normal(ks[2], (NLAYERS, NHID, NHID), jnp.float32),
        "b_root": s * jax.random.normal(ks[3], (NLAYERS, 1, NHID), jnp.float32),
        "w_conv": s * jax.random.normal(
            ks[4], (NLAYERS, N_EDGE_LABELS, NHID, NHID), jnp.float32),
        "w1": s * jax.random.normal(ks[5], (NHID, NHID), jnp.float32),
        "b1": s * jax.random.normal(ks[6], (1, NHID), jnp.float32),
        "w2": s * jax.random.normal(ks[7], (NHID, OUT_FEAT), jnp.float32),
        "b2": s * jax.random.normal(ks[8], (1, OUT_FEAT), jnp.float32),
    }


def fuse_params(p):
    """Fuse root + conv weights along the output axis; fold root bias."""
    w_big = jnp.concatenate(
        [p["w_root"]] + [p["w_conv"][:, e] for e in range(N_EDGE_LABELS)],
        axis=-1)                                              # (NLAYERS, NHID, 96)
    b_big = jnp.concatenate(
        [p["b_root"],
         jnp.zeros((NLAYERS, 1, N_EDGE_LABELS * NHID), jnp.float32)],
        axis=-1)                                              # (NLAYERS, 1, 96)
    return {
        "w_emb": p["w_emb"], "b_emb": p["b_emb"],
        "w_big": w_big, "b_big": b_big,
        "w1": p["w1"], "b1": p["b1"],
        "w2_row": p["w2"].T,                                  # (1, NHID)
        "b2": p["b2"],                                        # (1, 1)
    }


def build_block_graph():
    """GPB graphs of NODES_PER_GRAPH nodes inside one NPB-node block.
    Edge label 0 = ring, label 1 = skip-by-2, kept within each graph."""
    nodes = jnp.arange(NPB, dtype=jnp.int32)
    base = (nodes // NODES_PER_GRAPH) * NODES_PER_GRAPH
    ring_dst = (nodes + 1) % NODES_PER_GRAPH + base
    skip_dst = (nodes + 2) % NODES_PER_GRAPH + base

    def dense(dst, src):
        # PyG flow='source_to_target': message x_j (src) aggregated at dst.
        a = jnp.zeros((NPB, NPB), jnp.float32)
        return a.at[dst, src].add(1.0)

    adj = jnp.stack([dense(ring_dst, nodes), dense(skip_dst, nodes)])  # (L, NPB, NPB)
    batch = nodes // NODES_PER_GRAPH
    pool = jax.nn.one_hot(batch, GPB, dtype=jnp.float32).T             # (GPB, NPB)
    return adj, pool


def rgnn_reference(x, adj_per_label, pool, p):
    """Plain-JAX, unfused, f32 reference with the original (torch-layout) params."""
    h = x @ p["w_emb"] + p["b_emb"]
    for l in range(NLAYERS):
        out = h @ p["w_root"][l] + p["b_root"][l]
        for e in range(N_EDGE_LABELS):
            out = out + jnp.einsum("bij,bjk->bik",
                                   adj_per_label[:, e], h @ p["w_conv"][l, e])
        h = jnp.where(out > 0, out, NEG_SLOPE * out)
    g = jnp.einsum("bgn,bnk->bgk", pool, h)
    z = jnp.maximum(g @ p["w1"] + p["b1"], 0.0)
    o = z @ p["w2"] + p["b2"]
    return o.reshape(-1)


if __name__ == "__main__":
    key = jax.random.PRNGKey(0)
    k_feat, k_param = jax.random.split(key)

    B = 2                                   # graph-batch blocks (grid size)
    x = jax.random.normal(k_feat, (B, NPB, IN_FEAT), jnp.float32)

    adj, pool = build_block_graph()
    adj_per_label = jnp.broadcast_to(adj, (B,) + adj.shape)            # (B, L, NPB, NPB) f32
    # Kernel layout: concatenate labels along lanes -> (B, NPB, L*NPB), bf16 (0/1 exact)
    adj_cat = jnp.concatenate(
        [adj_per_label[:, e] for e in range(N_EDGE_LABELS)], axis=-1
    ).astype(jnp.bfloat16)
    pool_b = jnp.broadcast_to(pool, (B,) + pool.shape)                 # (B, GPB, NPB)

    params = init_params(k_param)
    fused = fuse_params(params)

    out = rgnn_forward(x, adj_cat, pool_b, fused)
    jax.block_until_ready(out)

    ref = rgnn_reference(x, adj_per_label, pool_b, params)
    assert out.shape == (B * GPB,)
    assert jnp.allclose(out, ref, atol=5e-2, rtol=5e-2), \
        float(jnp.max(jnp.abs(out - ref)))
    print("KERNEL_OK")
</pallas_src>

<mosaic_0001>
module attributes {stable_mosaic.version = 11 : i64} {
  func.func @rgnn_kernel(%arg0: i32, %arg1: memref<1x128x8xf32, #tpu.memory_space<vmem>>, %arg2: memref<1x128x256xbf16, #tpu.memory_space<vmem>>, %arg3: memref<1x16x128xf32, #tpu.memory_space<vmem>>, %arg4: memref<8x32xf32, #tpu.memory_space<vmem>>, %arg5: memref<1x32xf32, #tpu.memory_space<vmem>>, %arg6: memref<2x32x96xf32, #tpu.memory_space<vmem>>, %arg7: memref<2x1x96xf32, #tpu.memory_space<vmem>>, %arg8: memref<32x32xf32, #tpu.memory_space<vmem>>, %arg9: memref<1x32xf32, #tpu.memory_space<vmem>>, %arg10: memref<1x32xf32, #tpu.memory_space<vmem>>, %arg11: memref<1x1xf32, #tpu.memory_space<vmem>>, %arg12: memref<1x16x1xf32, #tpu.memory_space<vmem>>) attributes {dimension_semantics = [#tpu.dimension_semantics<parallel>], iteration_bounds = array<i64: 2>, scalar_prefetch = 0 : i64, scratch_operands = 0 : i64, tpu.core_type = #tpu.core_type<tc>, window_params = [{transform_indices = @transform_0, window_bounds = array<i64: 1, 128, 8>}, {transform_indices = @transform_1, window_bounds = array<i64: 1, 128, 256>}, {transform_indices = @transform_2, window_bounds = array<i64: 1, 16, 128>}, {pipeline_mode = #tpu.pipeline_mode<synchronous>, transform_indices = @transform_3, window_bounds = array<i64: 8, 32>}, {pipeline_mode = #tpu.pipeline_mode<synchronous>, transform_indices = @transform_4, window_bounds = array<i64: 1, 32>}, {pipeline_mode = #tpu.pipeline_mode<synchronous>, transform_indices = @transform_5, window_bounds = array<i64: 2, 32, 96>}, {pipeline_mode = #tpu.pipeline_mode<synchronous>, transform_indices = @transform_6, window_bounds = array<i64: 2, 1, 96>}, {pipeline_mode = #tpu.pipeline_mode<synchronous>, transform_indices = @transform_7, window_bounds = array<i64: 32, 32>}, {pipeline_mode = #tpu.pipeline_mode<synchronous>, transform_indices = @transform_8, window_bounds = array<i64: 1, 32>}, {pipeline_mode = #tpu.pipeline_mode<synchronous>, transform_indices = @transform_9, window_bounds = array<i64: 1, 32>}, {pipeline_mode = #tpu.pipeline_mode<synchronous>, transform_indices = @transform_10, window_bounds = array<i64: 1, 1>}, {transform_indices = @transform_11, window_bounds = array<i64: 1, 16, 1>}]} {
    %c0 = arith.constant 0 : index
    %c0_0 = arith.constant 0 : index
    %c0_1 = arith.constant 0 : index
    %0 = vector.load %arg1[%c0, %c0_0, %c0_1] : memref<1x128x8xf32, #tpu.memory_space<vmem>>, vector<1x128x8xf32>
    %1 = vector.shape_cast %0 : vector<1x128x8xf32> to vector<128x8xf32>
    %c0_2 = arith.constant 0 : index
    %c0_3 = arith.constant 0 : index
    %c0_4 = arith.constant 0 : index
    %2 = vector.load %arg2[%c0_2, %c0_3, %c0_4] : memref<1x128x256xbf16, #tpu.memory_space<vmem>>, vector<1x128x256xbf16>
    %3 = vector.shape_cast %2 : vector<1x128x256xbf16> to vector<128x256xbf16>
    %c0_5 = arith.constant 0 : index
    %c0_6 = arith.constant 0 : index
    %c0_7 = arith.constant 0 : index
    %4 = vector.load %arg3[%c0_5, %c0_6, %c0_7] : memref<1x16x128xf32, #tpu.memory_space<vmem>>, vector<1x16x128xf32>
    %5 = vector.shape_cast %4 : vector<1x16x128xf32> to vector<16x128xf32>
    %c0_8 = arith.constant 0 : index
    %c0_9 = arith.constant 0 : index
    %6 = vector.load %arg4[%c0_8, %c0_9] : memref<8x32xf32, #tpu.memory_space<vmem>>, vector<8x32xf32>
    %cst = arith.constant dense<0.000000e+00> : vector<128x32xf32>
    %7 = tpu.matmul %1, %6, %cst {dimension_numbers = #tpu.dot_dimension_numbers<[1], [0], [0], [1], [0, 0, 1, 1], [], []>} : vector<128x8xf32>, vector<8x32xf32>, vector<128x32xf32> -> vector<128x32xf32>
    %c0_10 = arith.constant 0 : index
    %c0_11 = arith.constant 0 : index
    %8 = vector.load %arg5[%c0_10, %c0_11] : memref<1x32xf32, #tpu.memory_space<vmem>>, vector<1x32xf32>
    %9 = vector.broadcast %8 : vector<1x32xf32> to vector<128x32xf32>
    %10 = arith.addf %7, %9 : vector<128x32xf32>
    %c0_12 = arith.constant 0 : index
    %c0_13 = arith.constant 0 : index
    %c0_14 = arith.constant 0 : index
    %11 = vector.load %arg6[%c0_12, %c0_13, %c0_14] : memref<2x32x96xf32, #tpu.memory_space<vmem>>, vector<1x32x96xf32>
    %12 = vector.shape_cast %11 : vector<1x32x96xf32> to vector<32x96xf32>
    %cst_15 = arith.constant dense<0.000000e+00> : vector<128x96xf32>
    %13 = tpu.matmul %10, %12, %cst_15 {dimension_numbers = #tpu.dot_dimension_numbers<[1], [0], [0], [1], [0, 0, 1, 1], [], []>} : vector<128x32xf32>, vector<32x96xf32>, vector<128x96xf32> -> vector<128x96xf32>
    %c0_16 = arith.constant 0 : index
    %c0_17 = arith.constant 0 : index
    %c0_18 = arith.constant 0 : index
    %14 = vector.load %arg7[%c0_16, %c0_17, %c0_18] : memref<2x1x96xf32, #tpu.memory_space<vmem>>, vector<1x1x96xf32>
    %15 = vector.shape_cast %14 : vector<1x1x96xf32> to vector<1x96xf32>
    %16 = vector.broadcast %15 : vector<1x96xf32> to vector<128x96xf32>
    %17 = arith.addf %13, %16 : vector<128x96xf32>
    %18 = vector.extract_strided_slice %17 {offsets = [0, 0], sizes = [128, 32], strides = [1, 1]} : vector<128x96xf32> to vector<128x32xf32>
    %19 = vector.extract_strided_slice %17 {offsets = [0, 32], sizes = [128, 32], strides = [1, 1]} : vector<128x96xf32> to vector<128x32xf32>
    %20 = vector.extract_strided_slice %17 {offsets = [0, 64], sizes = [128, 32], strides = [1, 1]} : vector<128x96xf32> to vector<128x32xf32>
    %21 = tpu.concatenate %19, %20 in 0 : vector<128x32xf32>, vector<128x32xf32> -> vector<256x32xf32>
    %22 = arith.truncf %21 : vector<256x32xf32> to vector<256x32xbf16>
    %cst_19 = arith.constant dense<0.000000e+00> : vector<128x32xf32>
    %23 = tpu.matmul %3, %22, %cst_19 {dimension_numbers = #tpu.dot_dimension_numbers<[1], [0], [0], [1], [0, 0, 1, 1], [], []>} : vector<128x256xbf16>, vector<256x32xbf16>, vector<128x32xf32> -> vector<128x32xf32>
    %24 = arith.addf %18, %23 : vector<128x32xf32>
    %cst_20 = arith.constant 0.000000e+00 : f32
    %25 = vector.broadcast %cst_20 : f32 to vector<128x32xf32>
    %26 = arith.cmpf ogt, %24, %25 : vector<128x32xf32>
    %cst_21 = arith.constant 0.00999999977 : f32
    %27 = vector.broadcast %cst_21 : f32 to vector<128x32xf32>
    %28 = arith.mulf %27, %24 : vector<128x32xf32>
    %29 = arith.select %26, %24, %28 : vector<128x32xi1>, vector<128x32xf32>
    %c1 = arith.constant 1 : index
    %c0_22 = arith.constant 0 : index
    %c0_23 = arith.constant 0 : index
    %30 = vector.load %arg6[%c1, %c0_22, %c0_23] : memref<2x32x96xf32, #tpu.memory_space<vmem>>, vector<1x32x96xf32>
    %31 = vector.shape_cast %30 : vector<1x32x96xf32> to vector<32x96xf32>
    %cst_24 = arith.constant dense<0.000000e+00> : vector<128x96xf32>
    %32 = tpu.matmul %29, %31, %cst_24 {dimension_numbers = #tpu.dot_dimension_numbers<[1], [0], [0], [1], [0, 0, 1, 1], [], []>} : vector<128x32xf32>, vector<32x96xf32>, vector<128x96xf32> -> vector<128x96xf32>
    %c1_25 = arith.constant 1 : index
    %c0_26 = arith.constant 0 : index
    %c0_27 = arith.constant 0 : index
    %33 = vector.load %arg7[%c1_25, %c0_26, %c0_27] : memref<2x1x96xf32, #tpu.memory_space<vmem>>, vector<1x1x96xf32>
    %34 = vector.shape_cast %33 : vector<1x1x96xf32> to vector<1x96xf32>
    %35 = vector.broadcast %34 : vector<1x96xf32> to vector<128x96xf32>
    %36 = arith.addf %32, %35 : vector<128x96xf32>
    %37 = vector.extract_strided_slice %36 {offsets = [0, 0], sizes = [128, 32], strides = [1, 1]} : vector<128x96xf32> to vector<128x32xf32>
    %38 = vector.extract_strided_slice %36 {offsets = [0, 32], sizes = [128, 32], strides = [1, 1]} : vector<128x96xf32> to vector<128x32xf32>
    %39 = vector.extract_strided_slice %36 {offsets = [0, 64], sizes = [128, 32], strides = [1, 1]} : vector<128x96xf32> to vector<128x32xf32>
    %40 = tpu.concatenate %38, %39 in 0 : vector<128x32xf32>, vector<128x32xf32> -> vector<256x32xf32>
    %41 = arith.truncf %40 : vector<256x32xf32> to vector<256x32xbf16>
    %cst_28 = arith.constant dense<0.000000e+00> : vector<128x32xf32>
    %42 = tpu.matmul %3, %41, %cst_28 {dimension_numbers = #tpu.dot_dimension_numbers<[1], [0], [0], [1], [0, 0, 1, 1], [], []>} : vector<128x256xbf16>, vector<256x32xbf16>, vector<128x32xf32> -> vector<128x32xf32>
    %43 = arith.addf %37, %42 : vector<128x32xf32>
    %cst_29 = arith.constant 0.000000e+00 : f32
    %44 = vector.broadcast %cst_29 : f32 to vector<128x32xf32>
    %45 = arith.cmpf ogt, %43, %44 : vector<128x32xf32>
    %cst_30 = arith.constant 0.00999999977 : f32
    %46 = vector.broadcast %cst_30 : f32 to vector<128x32xf32>
    %47 = arith.mulf %46, %43 : vector<128x32xf32>
    %48 = arith.select %45, %43, %47 : vector<128x32xi1>, vector<128x32xf32>
    %cst_31 = arith.constant dense<0.000000e+00> : vector<16x32xf32>
    %49 = tpu.matmul %5, %48, %cst_31 {dimension_numbers = #tpu.dot_dimension_numbers<[1], [0], [0], [1], [0, 0, 1, 1], [], []>} : vector<16x128xf32>, vector<128x32xf32>, vector<16x32xf32> -> vector<16x32xf32>
    %c0_32 = arith.constant 0 : index
    %c0_33 = arith.constant 0 : index
    %50 = vector.load %arg8[%c0_32, %c0_33] : memref<32x32xf32, #tpu.memory_space<vmem>>, vector<32x32xf32>
    %cst_34 = arith.constant dense<0.000000e+00> : vector<16x32xf32>
    %51 = tpu.matmul %49, %50, %cst_34 {dimension_numbers = #tpu.dot_dimension_numbers<[1], [0], [0], [1], [0, 0, 1, 1], [], []>} : vector<16x32xf32>, vector<32x32xf32>, vector<16x32xf32> -> vector<16x32xf32>
    %c0_35 = arith.constant 0 : index
    %c0_36 = arith.constant 0 : index
    %52 = vector.load %arg9[%c0_35, %c0_36] : memref<1x32xf32, #tpu.memory_space<vmem>>, vector<1x32xf32>
    %53 = vector.broadcast %52 : vector<1x32xf32> to vector<16x32xf32>
    %54 = arith.addf %51, %53 : vector<16x32xf32>
    %cst_37 = arith.constant 0.000000e+00 : f32
    %55 = vector.broadcast %cst_37 : f32 to vector<16x32xf32>
    %56 = arith.maximumf %54, %55 : vector<16x32xf32>
    %c0_38 = arith.constant 0 : index
    %c0_39 = arith.constant 0 : index
    %57 = vector.load %arg10[%c0_38, %c0_39] : memref<1x32xf32, #tpu.memory_space<vmem>>, vector<1x32xf32>
    %58 = vector.broadcast %57 : vector<1x32xf32> to vector<16x32xf32>
    %59 = arith.mulf %56, %58 : vector<16x32xf32>
    %cst_40 = arith.constant dense<0.000000e+00> : vector<16xf32>
    %60 = vector.multi_reduction <add>, %59, %cst_40 [1] : vector<16x32xf32> to vector<16xf32>
    %61 = vector.shape_cast %60 : vector<16xf32> to vector<16x1xf32>
    %c0_41 = arith.constant 0 : index
    %c0_42 = arith.constant 0 : index
    %62 = vector.load %arg11[%c0_41, %c0_42] : memref<1x1xf32, #tpu.memory_space<vmem>>, vector<1x1xf32>
    %63 = vector.broadcast %62 : vector<1x1xf32> to vector<16x1xf32>
    %64 = arith.addf %61, %63 : vector<16x1xf32>
    %c0_43 = arith.constant 0 : index
    %c0_44 = arith.constant 0 : index
    %c0_45 = arith.constant 0 : index
    %65 = vector.load %arg12[%c0_43, %c0_44, %c0_45] : memref<1x16x1xf32, #tpu.memory_space<vmem>>, vector<1x16x1xf32>
    %66 = vector.shape_cast %65 : vector<1x16x1xf32> to vector<16x1xf32>
    %67 = vector.shape_cast %64 : vector<16x1xf32> to vector<1x16x1xf32>
    tpu.vector_store %arg12[%c0_43, %c0_44, %c0_45], %67 {strides = array<i32>} : memref<1x16x1xf32, #tpu.memory_space<vmem>>, vector<1x16x1xf32>,
    return
  }
  func.func @transform_0(%arg0: i32) -> (i32, i32, i32) {
    %c0_i32 = arith.constant 0 : i32
    %c0_i32_0 = arith.constant 0 : i32
    %c0_i32_1 = arith.constant 0 : i32
    return %arg0, %c0_i32, %c0_i32_0 : i32, i32, i32
  }
  func.func @transform_1(%arg0: i32) -> (i32, i32, i32) {
    %c0_i32 = arith.constant 0 : i32
    %c0_i32_0 = arith.constant 0 : i32
    %c0_i32_1 = arith.constant 0 : i32
    return %arg0, %c0_i32, %c0_i32_0 : i32, i32, i32
  }
  func.func @transform_2(%arg0: i32) -> (i32, i32, i32) {
    %c0_i32 = arith.constant 0 : i32
    %c0_i32_0 = arith.constant 0 : i32
    %c0_i32_1 = arith.constant 0 : i32
    return %arg0, %c0_i32, %c0_i32_0 : i32, i32, i32
  }
  func.func @transform_3(%arg0: i32) -> (i32, i32) {
    %c0_i32 = arith.constant 0 : i32
    %c0_i32_0 = arith.constant 0 : i32
    %c0_i32_1 = arith.constant 0 : i32
    return %c0_i32, %c0_i32_0 : i32, i32
  }
  func.func @transform_4(%arg0: i32) -> (i32, i32) {
    %c0_i32 = arith.constant 0 : i32
    %c0_i32_0 = arith.constant 0 : i32
    %c0_i32_1 = arith.constant 0 : i32
    return %c0_i32, %c0_i32_0 : i32, i32
  }
  func.func @transform_5(%arg0: i32) -> (i32, i32, i32) {
    %c0_i32 = arith.constant 0 : i32
    %c0_i32_0 = arith.constant 0 : i32
    %c0_i32_1 = arith.constant 0 : i32
    %c0_i32_2 = arith.constant 0 : i32
    return %c0_i32, %c0_i32_0, %c0_i32_1 : i32, i32, i32
  }
  func.func @transform_6(%arg0: i32) -> (i32, i32, i32) {
    %c0_i32 = arith.constant 0 : i32
    %c0_i32_0 = arith.constant 0 : i32
    %c0_i32_1 = arith.constant 0 : i32
    %c0_i32_2 = arith.constant 0 : i32
    return %c0_i32, %c0_i32_0, %c0_i32_1 : i32, i32, i32
  }
  func.func @transform_7(%arg0: i32) -> (i32, i32) {
    %c0_i32 = arith.constant 0 : i32
    %c0_i32_0 = arith.constant 0 : i32
    %c0_i32_1 = arith.constant 0 : i32
    return %c0_i32, %c0_i32_0 : i32, i32
  }
  func.func @transform_8(%arg0: i32) -> (i32, i32) {
    %c0_i32 = arith.constant 0 : i32
    %c0_i32_0 = arith.constant 0 : i32
    %c0_i32_1 = arith.constant 0 : i32
    return %c0_i32, %c0_i32_0 : i32, i32
  }
  func.func @transform_9(%arg0: i32) -> (i32, i32) {
    %c0_i32 = arith.constant 0 : i32
    %c0_i32_0 = arith.constant 0 : i32
    %c0_i32_1 = arith.constant 0 : i32
    return %c0_i32, %c0_i32_0 : i32, i32
  }
  func.func @transform_10(%arg0: i32) -> (i32, i32) {
    %c0_i32 = arith.constant 0 : i32
    %c0_i32_0 = arith.constant 0 : i32
    %c0_i32_1 = arith.constant 0 : i32
    return %c0_i32, %c0_i32_0 : i32, i32
  }
  func.func @transform_11(%arg0: i32) -> (i32, i32, i32) {
    %c0_i32 = arith.constant 0 : i32
    %c0_i32_0 = arith.constant 0 : i32
    %c0_i32_1 = arith.constant 0 : i32
    return %arg0, %c0_i32, %c0_i32_0 : i32, i32, i32
  }
}

</mosaic_0001>

<llo_original>
// kernel: tpu_custom_call.1
$region0: #{tpu_custom_call.1}
  #allocation0 [shape = 'u32[]', space=smem, size = 0x4, offset = 0x4, fixed_abs, tag = 'smem constant byte address 0x4 - core index']
  #allocation1 [shape = 'u32[144,128]{1,0:T(1,128)}', space=vmem, size = 0x12000, scoped, tag = 'internal scratch']
  #allocation2 [shape = 'f32[1,1]{1,0:T(1,128)S(1)}', space=vmem, size = 0x200, scoped, tag = 'scoped memory for tpu_custom_call.1']
  %s0 = inlined_call_operand.vmem [shape: f32[2,128,8], index: 0, kind: input, shape index: {}]
  %s1 = inlined_call_operand.vmem [shape: bf16[2,128,256], index: 1, kind: input, shape index: {}]
  %s2 = inlined_call_operand.hbm [shape: f32[2,16,128], index: 2, kind: input, shape index: {}]
  %s3 = inlined_call_operand.hbm [shape: f32[8,32], index: 3, kind: input, shape index: {}]
  %s4 = inlined_call_operand.hbm [shape: f32[1,32], index: 4, kind: input, shape index: {}]
  %s5 = inlined_call_operand.hbm [shape: f32[2,32,96], index: 5, kind: input, shape index: {}]
  %s6 = inlined_call_operand.vmem [shape: f32[2,1,96], index: 6, kind: input, shape index: {}]
  %s7 = inlined_call_operand.vmem [shape: f32[32,32], index: 7, kind: input, shape index: {}]
  %s8 = inlined_call_operand.vmem [shape: f32[1,32], index: 8, kind: input, shape index: {}]
  %s9 = inlined_call_operand.vmem [shape: f32[1,32], index: 9, kind: input, shape index: {}]
  %s10 = inlined_call_operand.<no memory space> [shape: f32[1,1], index: 10, kind: input, shape index: {}]
  %s11 = inlined_call_operand.vmem [shape: f32[2,16,1], index: 11, kind: output, shape index: {}]
  %s12 = sld [smem:[#allocation0]]
  $region93: #{tpu_custom_call.1} parent=0
    _
  %s14 = ssub.s32 1, %s12
  %s15 = scalar_select 0, %s14, %s12
  %v16 = vstv %s10
  %17 = vst [vmem:[#allocation2] sm:$0x1] %v16
  $region1: #{tpu_custom_call.1} parent=0
    #allocation3 [shape = 'u8[16384]{0}', space=vmem, size = 0x4000, scoped, tag = 'input window, operand 2']
    #allocation4 [shape = 's32[2]{0}', space=sflag, size = 0x8, scoped, tag = 'scoped memory for tpu_custom_call.1']
    #allocation5 [shape = 'u8[4096]{0}', space=vmem, size = 0x1000, scoped, tag = 'input window, operand 3, single buffered']
    #allocation6 [shape = 's32[1]{0}', space=sflag, size = 0x4, scoped, tag = 'scoped memory for tpu_custom_call.1']
    #allocation7 [shape = 'u8[512]{0}', space=vmem, size = 0x400, scoped, tag = 'input window, operand 4, single buffered']
    #allocation8 [shape = 'u8[32768]{0}', space=vmem, size = 0x8000, scoped, tag = 'input window, operand 5, single buffered']
    #allocation9 [shape = 's32[1]{0}', space=sflag, size = 0x4, scoped, tag = 'scoped memory for tpu_custom_call.1']
    %18 = vsyncpa [#allocation4], 0
    %s19 = scalar_lea.sflag [#allocation4], 1
    %20 = vsyncpa %s19, 0
    %21 = vsyncpa [#allocation6], 0
    %22 = vsyncpa [#allocation9], 0
    loop: start=0, step=1, limit=4
    $region2: #{tpu_custom_call.1} parent=1 // loop_pre_header
      _
    $region3: #{tpu_custom_call.1} parent=1 // loop_header
      %s24 = sphi 0, %s28
      %p25 = scmp.ge.s32.totalorder %s24, 4
      %s34 = sphi 0, %s36
      %s37 = sphi 0, %s34
      %s38 = sphi 0, %s37
      %s54 = sphi 0, %s38
      %s60 = sphi 0, %s62
      %s63 = sphi 0, %s60
      %s64 = sphi 0, %s63
      %s80 = sphi 0, %s64
      %s86 = sphi 0, %s88
      %s89 = sphi 0, %s86
      %s90 = sphi 0, %s89
      %s106 = sphi 0, %s90
      %s110 = sphi 0, %s110
      %s112 = sphi 0, %s110
      %s113 = sphi 0, %s112
      %s127 = sphi 0, %s113
      %s131 = sphi 0, %s131
      %s133 = sphi 0, %s131
      %s134 = sphi 0, %s133
      %s148 = sphi 0, %s134
      %s152 = sphi 0, %s152
      %s154 = sphi 0, %s152
      %s155 = sphi 0, %s154
      %s169 = sphi 0, %s155
      %s173 = sphi 0, %s173
      %s175 = sphi 0, %s173
      %s176 = sphi 0, %s175
      %s190 = sphi 0, %s176
      %s194 = sphi 0, %s194
      %s196 = sphi 0, %s194
      %s197 = sphi 0, %s196
      %s211 = sphi 0, %s197
      %s215 = sphi 0, %s215
      %s217 = sphi 0, %s215
      %s218 = sphi 0, %s217
      %s232 = sphi 0, %s218
      %s236 = sphi 0, %s236
      %s238 = sphi 0, %s236
      %s239 = sphi 0, %s238
      %s253 = sphi 0, %s239
      %s257 = sphi 0, %s257
      %s259 = sphi 0, %s257
      %s260 = sphi 0, %s259
      %s274 = sphi 0, %s260
      %s280 = sphi 0, %s282
      %s283 = sphi 0, %s280
      %s284 = sphi 0, %s283
      %s300 = sphi 0, %s284
    $region4: #{tpu_custom_call.1} parent=1 // loop_header_branch
      %27 = sbr.rel (%p25) target = $region8
    $region5: #{tpu_custom_call.1} parent=1 // loop_body
      %s29 = ssub.s32 %s24, 1
      %s30 = ssub.s32 %s24, 2
      %s31 = sadd.s32 %s24, 1
      %s32 = ssub.s32 %s24, %s31
      %p33 = scmp.eq.s32.totalorder %s32, 0
      %s35 = sadd.s32 %s34, 1
      %s36 = scalar_select %p33, %s34, %s35
      %p39 = pneg %p33
      %p40 = scmp.eq.s32.totalorder %s24, 1
      %p41 = por %p39, %p40
      %p42 = scmp.ne.s32.totalorder %s34, %s37
      %p43 = scmp.eq.s32.totalorder %s24, 0
      %p44 = por %p42, %p43
      %p45 = scmp.ne.s32.totalorder %s34, %s37
      %p46 = scmp.eq.s32.totalorder %s29, 1
      %p47 = por %p45, %p46
      %p48 = scmp.ne.s32.totalorder %s37, %s38
      %p49 = scmp.eq.s32.totalorder %s29, 0
      %p50 = por %p48, %p49
      %p51 = scmp.ne.s32.totalorder %s37, %s38
      %p52 = scmp.eq.s32.totalorder %s30, 1
      %p53 = por %p51, %p52
      %p55 = scmp.ne.s32.totalorder %s38, %s54
      %p56 = scmp.eq.s32.totalorder %s30, 0
      %p57 = por %p55, %p56
      %s58 = ssub.s32 %s24, %s31
      %p59 = scmp.eq.s32.totalorder %s58, 0
      %s61 = sadd.s32 %s60, 1
      %s62 = scalar_select %p59, %s60, %s61
      %p65 = pneg %p59
      %p66 = scmp.eq.s32.totalorder %s24, 1
      %p67 = por %p65, %p66
      %p68 = scmp.ne.s32.totalorder %s60, %s63
      %p69 = scmp.eq.s32.totalorder %s24, 0
      %p70 = por %p68, %p69
      %p71 = scmp.ne.s32.totalorder %s60, %s63
      %p72 = scmp.eq.s32.totalorder %s29, 1
      %p73 = por %p71, %p72
      %p74 = scmp.ne.s32.totalorder %s63, %s64
      %p75 = scmp.eq.s32.totalorder %s29, 0
      %p76 = por %p74, %p75
      %p77 = scmp.ne.s32.totalorder %s63, %s64
      %p78 = scmp.eq.s32.totalorder %s30, 1
      %p79 = por %p77, %p78
      %p81 = scmp.ne.s32.totalorder %s64, %s80
      %p82 = scmp.eq.s32.totalorder %s30, 0
      %p83 = por %p81, %p82
      %s84 = ssub.s32 %s24, %s31
      %p85 = scmp.eq.s32.totalorder %s84, 0
      %s87 = sadd.s32 %s86, 1
      %s88 = scalar_select %p85, %s86, %s87
      %p91 = pneg %p85
      %p92 = scmp.eq.s32.totalorder %s24, 1
      %p93 = por %p91, %p92
      %p94 = scmp.ne.s32.totalorder %s86, %s89
      %p95 = scmp.eq.s32.totalorder %s24, 0
      %p96 = por %p94, %p95
      %p97 = scmp.ne.s32.totalorder %s86, %s89
      %p98 = scmp.eq.s32.totalorder %s29, 1
      %p99 = por %p97, %p98
      %p100 = scmp.ne.s32.totalorder %s89, %s90
      %p101 = scmp.eq.s32.totalorder %s29, 0
      %p102 = por %p100, %p101
      %p103 = scmp.ne.s32.totalorder %s89, %s90
      %p104 = scmp.eq.s32.totalorder %s30, 1
      %p105 = por %p103, %p104
      %p107 = scmp.ne.s32.totalorder %s90, %s106
      %p108 = scmp.eq.s32.totalorder %s30, 0
      %p109 = por %p107, %p108
      %s111 = sadd.s32 %s110, 1
      %p114 = scmp.eq.s32.totalorder %s24, 1
      %p115 = scmp.ne.s32.totalorder %s110, %s112
      %p116 = scmp.eq.s32.totalorder %s24, 0
      %p117 = por %p115, %p116
      %p118 = scmp.ne.s32.totalorder %s110, %s112
      %p119 = scmp.eq.s32.totalorder %s29, 1
      %p120 = por %p118, %p119
      %p121 = scmp.ne.s32.totalorder %s112, %s113
      %p122 = scmp.eq.s32.totalorder %s29, 0
      %p123 = por %p121, %p122
      %p124 = scmp.ne.s32.totalorder %s112, %s113
      %p125 = scmp.eq.s32.totalorder %s30, 1
      %p126 = por %p124, %p125
      %p128 = scmp.ne.s32.totalorder %s113, %s127
      %p129 = scmp.eq.s32.totalorder %s30, 0
      %p130 = por %p128, %p129
      %s132 = sadd.s32 %s131, 1
      %p135 = scmp.eq.s32.totalorder %s24, 1
      %p136 = scmp.ne.s32.totalorder %s131, %s133
      %p137 = scmp.eq.s32.totalorder %s24, 0
      %p138 = por %p136, %p137
      %p139 = scmp.ne.s32.totalorder %s131, %s133
      %p140 = scmp.eq.s32.totalorder %s29, 1
      %p141 = por %p139, %p140
      %p142 = scmp.ne.s32.totalorder %s133, %s134
      %p143 = scmp.eq.s32.totalorder %s29, 0
      %p144 = por %p142, %p143
      %p145 = scmp.ne.s32.totalorder %s133, %s134
      %p146 = scmp.eq.s32.totalorder %s30, 1
      %p147 = por %p145, %p146
      %p149 = scmp.ne.s32.totalorder %s134, %s148
      %p150 = scmp.eq.s32.totalorder %s30, 0
      %p151 = por %p149, %p150
      %s153 = sadd.s32 %s152, 1
      %p156 = scmp.eq.s32.totalorder %s24, 1
      %p157 = scmp.ne.s32.totalorder %s152, %s154
      %p158 = scmp.eq.s32.totalorder %s24, 0
      %p159 = por %p157, %p158
      %p160 = scmp.ne.s32.totalorder %s152, %s154
      %p161 = scmp.eq.s32.totalorder %s29, 1
      %p162 = por %p160, %p161
      %p163 = scmp.ne.s32.totalorder %s154, %s155
      %p164 = scmp.eq.s32.totalorder %s29, 0
      %p165 = por %p163, %p164
      %p166 = scmp.ne.s32.totalorder %s154, %s155
      %p167 = scmp.eq.s32.totalorder %s30, 1
      %p168 = por %p166, %p167
      %p170 = scmp.ne.s32.totalorder %s155, %s169
      %p171 = scmp.eq.s32.totalorder %s30, 0
      %p172 = por %p170, %p171
      %s174 = sadd.s32 %s173, 1
      %p177 = scmp.eq.s32.totalorder %s24, 1
      %p178 = scmp.ne.s32.totalorder %s173, %s175
      %p179 = scmp.eq.s32.totalorder %s24, 0
      %p180 = por %p178, %p179
      %p181 = scmp.ne.s32.totalorder %s173, %s175
      %p182 = scmp.eq.s32.totalorder %s29, 1
      %p183 = por %p181, %p182
      %p184 = scmp.ne.s32.totalorder %s175, %s176
      %p185 = scmp.eq.s32.totalorder %s29, 0
      %p186 = por %p184, %p185
      %p187 = scmp.ne.s32.totalorder %s175, %s176
      %p188 = scmp.eq.s32.totalorder %s30, 1
      %p189 = por %p187, %p188
      %p191 = scmp.ne.s32.totalorder %s176, %s190
      %p192 = scmp.eq.s32.totalorder %s30, 0
      %p193 = por %p191, %p192
      %s195 = sadd.s32 %s194, 1
      %p198 = scmp.eq.s32.totalorder %s24, 1
      %p199 = scmp.ne.s32.totalorder %s194, %s196
      %p200 = scmp.eq.s32.totalorder %s24, 0
      %p201 = por %p199, %p200
      %p202 = scmp.ne.s32.totalorder %s194, %s196
      %p203 = scmp.eq.s32.totalorder %s29, 1
      %p204 = por %p202, %p203
      %p205 = scmp.ne.s32.totalorder %s196, %s197
      %p206 = scmp.eq.s32.totalorder %s29, 0
      %p207 = por %p205, %p206
      %p208 = scmp.ne.s32.totalorder %s196, %s197
      %p209 = scmp.eq.s32.totalorder %s30, 1
      %p210 = por %p208, %p209
      %p212 = scmp.ne.s32.totalorder %s197, %s211
      %p213 = scmp.eq.s32.totalorder %s30, 0
      %p214 = por %p212, %p213
      %s216 = sadd.s32 %s215, 1
      %p219 = scmp.eq.s32.totalorder %s24, 1
      %p220 = scmp.ne.s32.totalorder %s215, %s217
      %p221 = scmp.eq.s32.totalorder %s24, 0
      %p222 = por %p220, %p221
      %p223 = scmp.ne.s32.totalorder %s215, %s217
      %p224 = scmp.eq.s32.totalorder %s29, 1
      %p225 = por %p223, %p224
      %p226 = scmp.ne.s32.totalorder %s217, %s218
      %p227 = scmp.eq.s32.totalorder %s29, 0
      %p228 = por %p226, %p227
      %p229 = scmp.ne.s32.totalorder %s217, %s218
      %p230 = scmp.eq.s32.totalorder %s30, 1
      %p231 = por %p229, %p230
      %p233 = scmp.ne.s32.totalorder %s218, %s232
      %p234 = scmp.eq.s32.totalorder %s30, 0
      %p235 = por %p233, %p234
      %s237 = sadd.s32 %s236, 1
      %p240 = scmp.eq.s32.totalorder %s24, 1
      %p241 = scmp.ne.s32.totalorder %s236, %s238
      %p242 = scmp.eq.s32.totalorder %s24, 0
      %p243 = por %p241, %p242
      %p244 = scmp.ne.s32.totalorder %s236, %s238
      %p245 = scmp.eq.s32.totalorder %s29, 1
      %p246 = por %p244, %p245
      %p247 = scmp.ne.s32.totalorder %s238, %s239
      %p248 = scmp.eq.s32.totalorder %s29, 0
      %p249 = por %p247, %p248
      %p250 = scmp.ne.s32.totalorder %s238, %s239
      %p251 = scmp.eq.s32.totalorder %s30, 1
      %p252 = por %p250, %p251
      %p254 = scmp.ne.s32.totalorder %s239, %s253
      %p255 = scmp.eq.s32.totalorder %s30, 0
      %p256 = por %p254, %p255
      %s258 = sadd.s32 %s257, 1
      %p261 = scmp.eq.s32.totalorder %s24, 1
      %p262 = scmp.ne.s32.totalorder %s257, %s259
      %p263 = scmp.eq.s32.totalorder %s24, 0
      %p264 = por %p262, %p263
      %p265 = scmp.ne.s32.totalorder %s257, %s259
      %p266 = scmp.eq.s32.totalorder %s29, 1
      %p267 = por %p265, %p266
      %p268 = scmp.ne.s32.totalorder %s259, %s260
      %p269 = scmp.eq.s32.totalorder %s29, 0
      %p270 = por %p268, %p269
      %p271 = scmp.ne.s32.totalorder %s259, %s260
      %p272 = scmp.eq.s32.totalorder %s30, 1
      %p273 = por %p271, %p272
      %p275 = scmp.ne.s32.totalorder %s260, %s274
      %p276 = scmp.eq.s32.totalorder %s30, 0
      %p277 = por %p275, %p276
      %s278 = ssub.s32 %s24, %s31
      %p279 = scmp.eq.s32.totalorder %s278, 0
      %s281 = sadd.s32 %s280, 1
      %s282 = scalar_select %p279, %s280, %s281
      %p285 = pneg %p279
      %p286 = scmp.eq.s32.totalorder %s24, 1
      %p287 = por %p285, %p286
      %p288 = scmp.ne.s32.totalorder %s280, %s283
      %p289 = scmp.eq.s32.totalorder %s24, 0
      %p290 = por %p288, %p289
      %p291 = scmp.ne.s32.totalorder %s280, %s283
      %p292 = scmp.eq.s32.totalorder %s29, 1
      %p293 = por %p291, %p292
      %p294 = scmp.ne.s32.totalorder %s283, %s284
      %p295 = scmp.eq.s32.totalorder %s29, 0
      %p296 = por %p294, %p295
      %p297 = scmp.ne.s32.totalorder %s283, %s284
      %p298 = scmp.eq.s32.totalorder %s30, 1
      %p299 = por %p297, %p298
      %p301 = scmp.ne.s32.totalorder %s284, %s300
      %p302 = scmp.eq.s32.totalorder %s30, 0
      %p303 = por %p301, %p302
      %p304 = scmp.le.s32.totalorder 1, %s24
      %p305 = scmp.lt.s32.totalorder %s24, 3
      %p306 = pnand %p304, %p305
      %p307 = pneg %p306
      // Predicated region
      $region9: #{tpu_custom_call.1} parent=5 // pred_check
        _
      $region10: #{tpu_custom_call.1} parent=5 // pred_check_branch
        %309 = sbr.rel (%p306) target = $region12
      $region11: #{tpu_custom_call.1} parent=5 // pred_region
        %s310 = ssub.s32 %s24, 1
        // Predicated region
        $region13: #{tpu_custom_call.1} parent=11 // pred_check
          %p311 = pneg %p123
        $region14: #{tpu_custom_call.1} parent=11 // pred_check_branch
          %313 = sbr.rel (%p311) target = $region16
        $region15: #{tpu_custom_call.1} parent=11 // pred_region
          %s315 = ssub.s32 128, 128
          %316 = vsyncadd [#allocation6], %s315
          %s318 = sshll.u32 [#allocation5], 4
          %s319 = int_to_ptr.vmem [resolvable:$true] %s318
          %321 = dma.hbm_to_vmem [thread:$0]  %s3, 128, %s319, [#allocation6]
        $region16: #{tpu_custom_call.1} parent=11 // pred_fallthru
          _
        // Predicated region
        $region17: #{tpu_custom_call.1} parent=11 // pred_check
          %p322 = pneg %p144
        $region18: #{tpu_custom_call.1} parent=11 // pred_check_branch
          %324 = sbr.rel (%p322) target = $region20
        $region19: #{tpu_custom_call.1} parent=11 // pred_region
          %s326 = ssub.s32 16, 16
          %327 = vsyncadd [#allocation6], %s326
          %s329 = sshll.u32 [#allocation7], 4
          %s330 = int_to_ptr.vmem [resolvable:$true] %s329
          %332 = dma.hbm_to_vmem [thread:$0]  %s4, 16, %s330, [#allocation6]
        $region20: #{tpu_custom_call.1} parent=11 // pred_fallthru
          _
        // Predicated region
        $region21: #{tpu_custom_call.1} parent=11 // pred_check
          %p333 = pneg %p165
        $region22: #{tpu_custom_call.1} parent=11 // pred_check_branch
          %335 = sbr.rel (%p333) target = $region24
        $region23: #{tpu_custom_call.1} parent=11 // pred_region
          %s337 = ssub.s32 1024, 1024
          %338 = vsyncadd [#allocation9], %s337
          %s339 = sshll.u32 [#allocation8], 4
          %s340 = int_to_ptr.vmem [resolvable:$true] %s339
          %345 = dma.hbm_to_vmem [thread:$0]  %s5, 1024, %s340, [#allocation9], 128, 128, 8
        $region24: #{tpu_custom_call.1} parent=11 // pred_fallthru
          _
        // Predicated region
        $region25: #{tpu_custom_call.1} parent=11 // pred_check
          %p346 = pneg %p186
        $region26: #{tpu_custom_call.1} parent=11 // pred_check_branch
          %348 = sbr.rel (%p346) target = $region28
        $region27: #{tpu_custom_call.1} parent=11 // pred_region
          _
        $region28: #{tpu_custom_call.1} parent=11 // pred_fallthru
          _
        // Predicated region
        $region29: #{tpu_custom_call.1} parent=11 // pred_check
          %p349 = pneg %p207
        $region30: #{tpu_custom_call.1} parent=11 // pred_check_branch
          %351 = sbr.rel (%p349) target = $region32
        $region31: #{tpu_custom_call.1} parent=11 // pred_region
          _
        $region32: #{tpu_custom_call.1} parent=11 // pred_fallthru
          _
        // Predicated region
        $region33: #{tpu_custom_call.1} parent=11 // pred_check
          %p352 = pneg %p228
        $region34: #{tpu_custom_call.1} parent=11 // pred_check_branch
          %354 = sbr.rel (%p352) target = $region36
        $region35: #{tpu_custom_call.1} parent=11 // pred_region
          _
        $region36: #{tpu_custom_call.1} parent=11 // pred_fallthru
          _
        // Predicated region
        $region37: #{tpu_custom_call.1} parent=11 // pred_check
          %p355 = pneg %p249
        $region38: #{tpu_custom_call.1} parent=11 // pred_check_branch
          %357 = sbr.rel (%p355) target = $region40
        $region39: #{tpu_custom_call.1} parent=11 // pred_region
          _
        $region40: #{tpu_custom_call.1} parent=11 // pred_fallthru
          _
        // Predicated region
        $region41: #{tpu_custom_call.1} parent=11 // pred_check
          %p358 = pneg %p270
        $region42: #{tpu_custom_call.1} parent=11 // pred_check_branch
          %360 = sbr.rel (%p358) target = $region44
        $region43: #{tpu_custom_call.1} parent=11 // pred_region
          _
        $region44: #{tpu_custom_call.1} parent=11 // pred_fallthru
          _
      $region12: #{tpu_custom_call.1} parent=5 // pred_fallthru
        _
      %p361 = scmp.lt.s32.totalorder %s24, 2
      // Predicated region
      $region45: #{tpu_custom_call.1} parent=5 // pred_check
        %p362 = pneg %p361
      $region46: #{tpu_custom_call.1} parent=5 // pred_check_branch
        %364 = sbr.rel (%p362) target = $region48
      $region47: #{tpu_custom_call.1} parent=5 // pred_region
        // Predicated region
        $region49: #{tpu_custom_call.1} parent=47 // pred_check
          %p365 = pneg %p44
        $region50: #{tpu_custom_call.1} parent=47 // pred_check_branch
          %367 = sbr.rel (%p365) target = $region52
        $region51: #{tpu_custom_call.1} parent=47 // pred_region
          %p368 = scmp.lt.s32.totalorder %s24, 1
          %s369 = scalar_select %p368, %s24, 1
          %s370 = smul.addr %s369, 16
          %s371 = smul.addr %s370, 8
          %s372 = scalar_lea.vmem %s0, %s371
        $region52: #{tpu_custom_call.1} parent=47 // pred_fallthru
          _
        // Predicated region
        $region53: #{tpu_custom_call.1} parent=47 // pred_check
          %p373 = pneg %p70
        $region54: #{tpu_custom_call.1} parent=47 // pred_check_branch
          %375 = sbr.rel (%p373) target = $region56
        $region55: #{tpu_custom_call.1} parent=47 // pred_region
          %p376 = scmp.lt.s32.totalorder %s24, 1
          %s377 = scalar_select %p376, %s24, 1
          %s378 = smul.addr %s377, 32
          %s379 = smul.addr %s378, 4
          %s380 = scalar_lea.vmem %s1, %s379
        $region56: #{tpu_custom_call.1} parent=47 // pred_fallthru
          _
        // Predicated region
        $region57: #{tpu_custom_call.1} parent=47 // pred_check
          %p381 = pneg %p96
        $region58: #{tpu_custom_call.1} parent=47 // pred_check_branch
          %383 = sbr.rel (%p381) target = $region60
        $region59: #{tpu_custom_call.1} parent=47 // pred_region
          %s384 = sand.u32 %s86, 1
          %s385 = scalar_lea.sflag [#allocation4], %s384
          %s386 = sand.u32 %s86, 1
          %s387 = smul.addr %s386, 16
          %s388 = scalar_lea.vmem [#allocation3], %s387
          %s390 = ssub.s32 256, 256
          %391 = vsyncadd %s385, %s390
          %s392 = smul.addr %s24, 2
          %s393 = smul.addr %s392, 128
          %s394 = scalar_lea.hbm %s2, %s393
          %s395 = sshll.u32 %s388, 4
          %s396 = int_to_ptr.vmem [resolvable:$true] %s395
          %401 = dma.hbm_to_vmem [thread:$0]  %s394, 256, %s396, %s385, 128, 128, 8
        $region60: #{tpu_custom_call.1} parent=47 // pred_fallthru
          _
      $region48: #{tpu_custom_call.1} parent=5 // pred_fallthru
        _
      %p402 = scmp.le.s32.totalorder 1, %s24
      %p403 = scmp.lt.s32.totalorder %s24, 3
      %p404 = pnand %p402, %p403
      %p405 = pneg %p404
      // Predicated region
      $region61: #{tpu_custom_call.1} parent=5 // pred_check
        _
      $region62: #{tpu_custom_call.1} parent=5 // pred_check_branch
        %407 = sbr.rel (%p404) target = $region64
      $region63: #{tpu_custom_call.1} parent=5 // pred_region
        %s408 = ssub.s32 %s24, 1
        %s409 = sand.u32 %s89, 1
        %s410 = scalar_lea.sflag [#allocation4], %s409
        %s411 = sand.u32 %s89, 1
        %s412 = smul.addr %s411, 16
        %s413 = scalar_lea.vmem [#allocation3], %s412
        // Predicated region
        $region65: #{tpu_custom_call.1} parent=63 // pred_check
          %p414 = pneg %p102
        $region66: #{tpu_custom_call.1} parent=63 // pred_check_branch
          %416 = sbr.rel (%p414) target = $region68
        $region67: #{tpu_custom_call.1} parent=63 // pred_region
          %417 = dma.done %s410, 256
        $region68: #{tpu_custom_call.1} parent=63 // pred_fallthru
          _
        // Predicated region
        $region69: #{tpu_custom_call.1} parent=63 // pred_check
          %p418 = pneg %p123
        $region70: #{tpu_custom_call.1} parent=63 // pred_check_branch
          %420 = sbr.rel (%p418) target = $region72
        $region71: #{tpu_custom_call.1} parent=63 // pred_region
          %421 = dma.done [#allocation6], 128
        $region72: #{tpu_custom_call.1} parent=63 // pred_fallthru
          _
        // Predicated region
        $region73: #{tpu_custom_call.1} parent=63 // pred_check
          %p422 = pneg %p144
        $region74: #{tpu_custom_call.1} parent=63 // pred_check_branch
          %424 = sbr.rel (%p422) target = $region76
        $region75: #{tpu_custom_call.1} parent=63 // pred_region
          %425 = dma.done [#allocation6], 16
        $region76: #{tpu_custom_call.1} parent=63 // pred_fallthru
          _
        // Predicated region
        $region77: #{tpu_custom_call.1} parent=63 // pred_check
          %p426 = pneg %p165
        $region78: #{tpu_custom_call.1} parent=63 // pred_check_branch
          %428 = sbr.rel (%p426) target = $region80
        $region79: #{tpu_custom_call.1} parent=63 // pred_region
          %429 = dma.done [#allocation9], 1024
        $region80: #{tpu_custom_call.1} parent=63 // pred_fallthru
          _
        %p430 = scmp.lt.s32.totalorder %s29, 1
        %s431 = scalar_select %p430, %s29, 1
        %s432 = smul.addr %s431, 16
        %s433 = smul.addr %s432, 8
        %s434 = scalar_lea.vmem %s0, %s433
        %p435 = pneg %p50
        %p436 = pneg %p47
        %p437 = scmp.lt.s32.totalorder %s29, 1
        %s438 = scalar_select %p437, %s29, 1
        %s439 = smul.addr %s438, 32
        %s440 = smul.addr %s439, 4
        %s441 = scalar_lea.vmem %s1, %s440
        %p442 = pneg %p76
        %p443 = pneg %p73
        %s444 = sand.u32 %s89, 1
        %s445 = scalar_lea.sflag [#allocation4], %s444
        %s446 = sand.u32 %s89, 1
        %s447 = smul.addr %s446, 16
        %s448 = scalar_lea.vmem [#allocation3], %s447
        %p449 = pneg %p102
        %p450 = pneg %p99
        %p451 = pneg %p123
        %p452 = pneg %p120
        %p453 = pneg %p144
        %p454 = pneg %p141
        %p455 = pneg %p165
        %p456 = pneg %p162
        %p457 = pneg %p186
        %p458 = pneg %p183
        %p459 = pneg %p207
        %p460 = pneg %p204
        %p461 = pneg %p228
        %p462 = pneg %p225
        %p463 = pneg %p249
        %p464 = pneg %p246
        %p465 = pneg %p270
        %p466 = pneg %p267
        %p467 = pneg %p296
        %p468 = pneg %p293
        %p469 = scmp.lt.s32.totalorder %s29, 1
        %s470 = scalar_select %p469, %s29, 1
        %s471 = smul.addr %s470, 2
        %s472 = smul.addr %s471, 8
        %s473 = scalar_lea.vmem %s11, %s472
        %p474 = scmp.lt.s32.totalorder %s29, 1
        %s475 = scalar_select %p474, %s29, 1
        %s476 = smul.addr %s475, 16
        %s477 = smul.addr %s476, 8
        %s478 = scalar_lea.vmem %s0, %s477
        %p479 = scmp.lt.s32.totalorder %s29, 1
        %s480 = scalar_select %p479, %s29, 1
        %s481 = smul.addr %s480, 32
        %s482 = smul.addr %s481, 4
        %s483 = scalar_lea.vmem %s1, %s482
        %p484 = scmp.lt.s32.totalorder %s29, 1
        %s485 = scalar_select %p484, %s29, 1
        %s486 = smul.addr %s485, 2
        %s487 = smul.addr %s486, 8
        %s488 = scalar_lea.vmem %s11, %s487
        %v490 = vld [vmem:[%s478] sm:$0xff]
        %v491 = vld [vmem:[%s478 + $0x8] sm:$0xff]
        %v492 = vld [vmem:[%s478 + $0x10] sm:$0xff]
        %v493 = vld [vmem:[%s478 + $0x18] sm:$0xff]
        %v494 = vld [vmem:[%s478 + $0x20] sm:$0xff]
        %v495 = vld [vmem:[%s478 + $0x28] sm:$0xff]
        %v496 = vld [vmem:[%s478 + $0x30] sm:$0xff]
        %v497 = vld [vmem:[%s478 + $0x38] sm:$0xff]
        %v498 = vld [vmem:[%s478 + $0x40] sm:$0xff]
        %v499 = vld [vmem:[%s478 + $0x48] sm:$0xff]
        %v500 = vld [vmem:[%s478 + $0x50] sm:$0xff]
        %v501 = vld [vmem:[%s478 + $0x58] sm:$0xff]
        %v502 = vld [vmem:[%s478 + $0x60] sm:$0xff]
        %v503 = vld [vmem:[%s478 + $0x68] sm:$0xff]
        %v504 = vld [vmem:[%s478 + $0x70] sm:$0xff]
        %v505 = vld [vmem:[%s478 + $0x78] sm:$0xff]
        %v506 = vld [vmem:[%s483] sm:$0xff]
        %v507 = vld [vmem:[%s483 + $0x8] sm:$0xff]
        %v508 = vld [vmem:[%s483 + $0x10] sm:$0xff]
        %v509 = vld [vmem:[%s483 + $0x18] sm:$0xff]
        %v510 = vld [vmem:[%s483 + $0x20] sm:$0xff]
        %v511 = vld [vmem:[%s483 + $0x28] sm:$0xff]
        %v512 = vld [vmem:[%s483 + $0x30] sm:$0xff]
        %v513 = vld [vmem:[%s483 + $0x38] sm:$0xff]
        %v514 = vld [vmem:[%s483 + $0x40] sm:$0xff]
        %v515 = vld [vmem:[%s483 + $0x48] sm:$0xff]
        %v516 = vld [vmem:[%s483 + $0x50] sm:$0xff]
        %v517 = vld [vmem:[%s483 + $0x58] sm:$0xff]
        %v518 = vld [vmem:[%s483 + $0x60] sm:$0xff]
        %v519 = vld [vmem:[%s483 + $0x68] sm:$0xff]
        %v520 = vld [vmem:[%s483 + $0x70] sm:$0xff]
        %v521 = vld [vmem:[%s483 + $0x78] sm:$0xff]
        %v522 = vld [vmem:[%s413] sm:$0xff]
        %v523 = vld [vmem:[%s413 + $0x8] sm:$0xff]
        %v524 = vld [vmem:[#allocation5] sm:$0xff]
        %v525 = vld [vmem:[#allocation7] sm:$0x1]
        %v527 = vlaneseq
        %v528 = vshrl.u32 %v527, 7
        %v529 = vsub.s32 0, %v528
        %v530 = vrot.slane %v525, %v529
        %vm532 = vcmask 64512
        %v534 = vsel %vm532, %v490, 0
        %v537 = vsel %vm532, %v491, 0
        %v540 = vsel %vm532, %v492, 0
        %v543 = vsel %vm532, %v493, 0
        %v546 = vsel %vm532, %v494, 0
        %v549 = vsel %vm532, %v495, 0
        %v552 = vsel %vm532, %v496, 0
        %v555 = vsel %vm532, %v497, 0
        %v558 = vsel %vm532, %v498, 0
        %v561 = vsel %vm532, %v499, 0
        %v564 = vsel %vm532, %v500, 0
        %v567 = vsel %vm532, %v501, 0
        %v570 = vsel %vm532, %v502, 0
        %v573 = vsel %vm532, %v503, 0
        %v576 = vsel %vm532, %v504, 0
        %v579 = vsel %vm532, %v505, 0
        %581 = vmatprep.subr.mxu0 0.0
        %582 = vmatpush1.msra.mxu0 %v524
        %583 = vmatprep.subr.mxu0 0.0
        %584 = vmatpush1.msra.mxu0 0.0
        %585 = vmatprep.subr.mxu0 0.0
        %586 = vmatpush1.msra.mxu0 0.0
        %587 = vmatprep.subr.mxu0 0.0
        %588 = vmatpush1.msra.mxu0 0.0
        %589 = vmatprep.subr.mxu0 0.0
        %590 = vmatpush1.msra.mxu0 0.0
        %591 = vmatprep.subr.mxu0 0.0
        %592 = vmatpush1.msra.mxu0 0.0
        %593 = vmatprep.subr.mxu0 0.0
        %594 = vmatpush1.msra.mxu0 0.0
        %595 = vmatprep.subr.mxu0 0.0
        %596 = vmatpush1.msra.mxu0 0.0
        %597 = vmatprep.subr.mxu0 0.0
        %598 = vmatpush1.msra.mxu0 0.0
        %599 = vmatprep.subr.mxu0 0.0
        %600 = vmatpush1.msra.mxu0 0.0
        %601 = vmatprep.subr.mxu0 0.0
        %602 = vmatpush1.msra.mxu0 0.0
        %603 = vmatprep.subr.mxu0 0.0
        %604 = vmatpush1.msra.mxu0 0.0
        %605 = vmatprep.subr.mxu0 0.0
        %606 = vmatpush1.msra.mxu0 0.0
        %607 = vmatprep.subr.mxu0 0.0
        %608 = vmatpush1.msra.mxu0 0.0
        %609 = vmatprep.subr.mxu0 0.0
        %610 = vmatpush1.msra.mxu0 0.0
        %611 = vmatprep.subr.mxu0 0.0
        %612 = vmatpush1.msra.mxu0 0.0
        %613 = vmatprep.subr.mxu0 0.0
        %614 = vmatpush1.msra.mxu0 0.0
        %615 = vmatprep.subr.mxu0 0.0
        %616 = vmatpush1.msra.mxu0 0.0
        %617 = vmatprep.subr.mxu0 0.0
        %618 = vmatpush1.msra.mxu0 0.0
        %619 = vmatprep.subr.mxu0 0.0
        %620 = vmatpush1.msra.mxu0 0.0
        %621 = vmatprep.subr.mxu0 0.0
        %622 = vmatpush1.msra.mxu0 0.0
        %623 = vmatprep.subr.mxu0 0.0
        %624 = vmatpush1.msra.mxu0 0.0
        %625 = vmatprep.subr.mxu0 0.0
        %626 = vmatpush1.msra.mxu0 0.0
        %627 = vmatprep.subr.mxu0 0.0
        %628 = vmatpush1.msra.mxu0 0.0
        %629 = vmatprep.subr.mxu0 0.0
        %630 = vmatpush1.msra.mxu0 0.0
        %631 = vmatprep.subr.mxu0 0.0
        %632 = vmatpush1.msra.mxu0 0.0
        %633 = vmatprep.subr.mxu0 0.0
        %634 = vmatpush1.msra.mxu0 0.0
        %635 = vmatprep.subr.mxu0 0.0
        %636 = vmatpush1.msra.mxu0 0.0
        %637 = vmatprep.subr.mxu0 0.0
        %638 = vmatpush1.msra.mxu0 0.0
        %639 = vmatprep.subr.mxu0 0.0
        %640 = vmatpush1.msra.mxu0 0.0
        %641 = vmatprep.subr.mxu0 0.0
        %642 = vmatpush1.msra.mxu0 0.0
        %643 = vmatprep.subr.mxu0 0.0
        %644 = vmatpush1.msra.mxu0 0.0
        %645 = vmatprep.mubr.f32.mxu0 0.0
        %646 = vmatmul.mubr.f32.gmra.mrb[0].mxu0 %v534
        %v647 = vpop.f32.mrb[0].mxu0
        %v648 = vadd.f32 %v530, %v647
        %v649 = vpop.f32.mrb[0].mxu0
        %650 = vmatprep.mubr.f32.mxu0 0.0
        %651 = vmatmul.mubr.f32.gmra.mrb[0].mxu0 %v537
        %v652 = vpop.f32.mrb[0].mxu0
        %v653 = vadd.f32 %v530, %v652
        %v654 = vpop.f32.mrb[0].mxu0
        %655 = vmatprep.mubr.f32.mxu0 0.0
        %656 = vmatmul.mubr.f32.gmra.mrb[0].mxu0 %v540
        %v657 = vpop.f32.mrb[0].mxu0
        %v658 = vadd.f32 %v530, %v657
        %v659 = vpop.f32.mrb[0].mxu0
        %660 = vmatprep.mubr.f32.mxu0 0.0
        %661 = vmatmul.mubr.f32.gmra.mrb[0].mxu0 %v543
        %v662 = vpop.f32.mrb[0].mxu0
        %v663 = vadd.f32 %v530, %v662
        %v664 = vpop.f32.mrb[0].mxu0
        %665 = vmatprep.mubr.f32.mxu0 0.0
        %666 = vmatmul.mubr.f32.gmra.mrb[0].mxu0 %v546
        %v667 = vpop.f32.mrb[0].mxu0
        %v668 = vadd.f32 %v530, %v667
        %v669 = vpop.f32.mrb[0].mxu0
        %670 = vmatprep.mubr.f32.mxu0 0.0
        %671 = vmatmul.mubr.f32.gmra.mrb[0].mxu0 %v549
        %v672 = vpop.f32.mrb[0].mxu0
        %v673 = vadd.f32 %v530, %v672
        %v674 = vpop.f32.mrb[0].mxu0
        %675 = vmatprep.mubr.f32.mxu0 0.0
        %676 = vmatmul.mubr.f32.gmra.mrb[0].mxu0 %v552
        %v677 = vpop.f32.mrb[0].mxu0
        %v678 = vadd.f32 %v530, %v677
        %v679 = vpop.f32.mrb[0].mxu0
        %680 = vmatprep.mubr.f32.mxu0 0.0
        %681 = vmatmul.mubr.f32.gmra.mrb[0].mxu0 %v555
        %v682 = vpop.f32.mrb[0].mxu0
        %v683 = vadd.f32 %v530, %v682
        %v684 = vpop.f32.mrb[0].mxu0
        %685 = vmatprep.mubr.f32.mxu0 0.0
        %686 = vmatmul.mubr.f32.gmra.mrb[0].mxu0 %v558
        %v687 = vpop.f32.mrb[0].mxu0
        %v688 = vadd.f32 %v530, %v687
        %v689 = vpop.f32.mrb[0].mxu0
        %690 = vmatprep.mubr.f32.mxu0 0.0
        %691 = vmatmul.mubr.f32.gmra.mrb[0].mxu0 %v561
        %v692 = vpop.f32.mrb[0].mxu0
        %v693 = vadd.f32 %v530, %v692
        %v694 = vpop.f32.mrb[0].mxu0
        %695 = vmatprep.mubr.f32.mxu0 0.0
        %696 = vmatmul.mubr.f32.gmra.mrb[0].mxu0 %v564
        %v697 = vpop.f32.mrb[0].mxu0
        %v698 = vadd.f32 %v530, %v697
        %v699 = vpop.f32.mrb[0].mxu0
        %700 = vmatprep.mubr.f32.mxu0 0.0
        %701 = vmatmul.mubr.f32.gmra.mrb[0].mxu0 %v567
        %v702 = vpop.f32.mrb[0].mxu0
        %v703 = vadd.f32 %v530, %v702
        %v704 = vpop.f32.mrb[0].mxu0
        %705 = vmatprep.mubr.f32.mxu0 0.0
        %706 = vmatmul.mubr.f32.gmra.mrb[0].mxu0 %v570
        %v707 = vpop.f32.mrb[0].mxu0
        %v708 = vadd.f32 %v530, %v707
        %v709 = vpop.f32.mrb[0].mxu0
        %710 = vmatprep.mubr.f32.mxu0 0.0
        %711 = vmatmul.mubr.f32.gmra.mrb[0].mxu0 %v573
        %v712 = vpop.f32.mrb[0].mxu0
        %v713 = vadd.f32 %v530, %v712
        %v714 = vpop.f32.mrb[0].mxu0
        %715 = vmatprep.mubr.f32.mxu0 0.0
        %716 = vmatmul.mubr.f32.gmra.mrb[0].mxu0 %v576
        %v717 = vpop.f32.mrb[0].mxu0
        %v718 = vadd.f32 %v530, %v717
        %v719 = vpop.f32.mrb[0].mxu0
        %720 = vmatprep.mubr.f32.mxu0 0.0
        %721 = vmatmul.mubr.f32.gmra.mrb[0].mxu0 %v579
        %v722 = vpop.f32.mrb[0].mxu0
        %v723 = vadd.f32 %v530, %v722
        %v724 = vpop.f32.mrb[0].mxu0
        %725 = vdwg.mxu0
        %v726 = vld [vmem:[#allocation8] sm:$0xff]
        %v727 = vld [vmem:[#allocation8 + $0x8] sm:$0xff]
        %v728 = vld [vmem:[#allocation8 + $0x10] sm:$0xff]
        %v729 = vld [vmem:[#allocation8 + $0x18] sm:$0xff]
        %v730 = vld [vmem:[%s6] sm:$0x1]
        %v732 = vlaneseq
        %v733 = vshrl.u32 %v732, 7
        %v734 = vsub.s32 0, %v733
        %v735 = vrot.slane %v730, %v734
        %vm737 = vcmask 261120
        %v739 = vsel %vm737, %v648, 0
        %v742 = vsel %vm737, %v653, 0
        %v745 = vsel %vm737, %v658, 0
        %v748 = vsel %vm737, %v663, 0
        %v751 = vsel %vm737, %v668, 0
        %v754 = vsel %vm737, %v673, 0
        %v757 = vsel %vm737, %v678, 0
        %v760 = vsel %vm737, %v683, 0
        %v763 = vsel %vm737, %v688, 0
        %v766 = vsel %vm737, %v693, 0
        %v769 = vsel %vm737, %v698, 0
        %v772 = vsel %vm737, %v703, 0
        %v775 = vsel %vm737, %v708, 0
        %v778 = vsel %vm737, %v713, 0
        %v781 = vsel %vm737, %v718, 0
        %v784 = vsel %vm737, %v723, 0
        %786 = vmatprep.subr.mxu0 0.0
        %787 = vmatpush1.msra.mxu0 %v726
        %788 = vmatprep.subr.mxu0 0.0
        %789 = vmatpush1.msra.mxu0 %v727
        %790 = vmatprep.subr.mxu0 0.0
        %791 = vmatpush1.msra.mxu0 %v728
        %792 = vmatprep.subr.mxu0 0.0
        %793 = vmatpush1.msra.mxu0 %v729
        %794 = vmatprep.subr.mxu0 0.0
        %795 = vmatpush1.msra.mxu0 0.0
        %796 = vmatprep.subr.mxu0 0.0
        %797 = vmatpush1.msra.mxu0 0.0
        %798 = vmatprep.subr.mxu0 0.0
        %799 = vmatpush1.msra.mxu0 0.0
        %800 = vmatprep.subr.mxu0 0.0
        %801 = vmatpush1.msra.mxu0 0.0
        %802 = vmatprep.subr.mxu0 0.0
        %803 = vmatpush1.msra.mxu0 0.0
        %804 = vmatprep.subr.mxu0 0.0
        %805 = vmatpush1.msra.mxu0 0.0
        %806 = vmatprep.subr.mxu0 0.0
        %807 = vmatpush1.msra.mxu0 0.0
        %808 = vmatprep.subr.mxu0 0.0
        %809 = vmatpush1.msra.mxu0 0.0
        %810 = vmatprep.subr.mxu0 0.0
        %811 = vmatpush1.msra.mxu0 0.0
        %812 = vmatprep.subr.mxu0 0.0
        %813 = vmatpush1.msra.mxu0 0.0
        %814 = vmatprep.subr.mxu0 0.0
        %815 = vmatpush1.msra.mxu0 0.0
        %816 = vmatprep.subr.mxu0 0.0
        %817 = vmatpush1.msra.mxu0 0.0
        %818 = vmatprep.subr.mxu0 0.0
        %819 = vmatpush1.msra.mxu0 0.0
        %820 = vmatprep.subr.mxu0 0.0
        %821 = vmatpush1.msra.mxu0 0.0
        %822 = vmatprep.subr.mxu0 0.0
        %823 = vmatpush1.msra.mxu0 0.0
        %824 = vmatprep.subr.mxu0 0.0
        %825 = vmatpush1.msra.mxu0 0.0
        %826 = vmatprep.subr.mxu0 0.0
        %827 = vmatpush1.msra.mxu0 0.0
        %828 = vmatprep.subr.mxu0 0.0
        %829 = vmatpush1.msra.mxu0 0.0
        %830 = vmatprep.subr.mxu0 0.0
        %831 = vmatpush1.msra.mxu0 0.0
        %832 = vmatprep.subr.mxu0 0.0
        %833 = vmatpush1.msra.mxu0 0.0
        %834 = vmatprep.subr.mxu0 0.0
        %835 = vmatpush1.msra.mxu0 0.0
        %836 = vmatprep.subr.mxu0 0.0
        %837 = vmatpush1.msra.mxu0 0.0
        %838 = vmatprep.subr.mxu0 0.0
        %839 = vmatpush1.msra.mxu0 0.0
        %840 = vmatprep.subr.mxu0 0.0
        %841 = vmatpush1.msra.mxu0 0.0
        %842 = vmatprep.subr.mxu0 0.0
        %843 = vmatpush1.msra.mxu0 0.0
        %844 = vmatprep.subr.mxu0 0.0
        %845 = vmatpush1.msra.mxu0 0.0
        %846 = vmatprep.subr.mxu0 0.0
        %847 = vmatpush1.msra.mxu0 0.0
        %848 = vmatprep.subr.mxu0 0.0
        %849 = vmatpush1.msra.mxu0 0.0
        %850 = vmatprep.mubr.f32.mxu0 0.0
        %851 = vmatmul.mubr.f32.gmra.mrb[0].mxu0 %v739
        %v852 = vpop.f32.mrb[0].mxu0
        %v853 = vadd.f32 %v735, %v852
        %v854 = vpop.f32.mrb[0].mxu0
        %855 = vmatprep.mubr.f32.mxu0 0.0
        %856 = vmatmul.mubr.f32.gmra.mrb[0].mxu0 %v742
        %v857 = vpop.f32.mrb[0].mxu0
        %v858 = vadd.f32 %v735, %v857
        %v859 = vpop.f32.mrb[0].mxu0
        %860 = vmatprep.mubr.f32.mxu0 0.0
        %861 = vmatmul.mubr.f32.gmra.mrb[0].mxu0 %v745
        %v862 = vpop.f32.mrb[0].mxu0
        %v863 = vadd.f32 %v735, %v862
        %v864 = vpop.f32.mrb[0].mxu0
        %865 = vmatprep.mubr.f32.mxu0 0.0
        %866 = vmatmul.mubr.f32.gmra.mrb[0].mxu0 %v748
        %v867 = vpop.f32.mrb[0].mxu0
        %v868 = vadd.f32 %v735, %v867
        %v869 = vpop.f32.mrb[0].mxu0
        %870 = vmatprep.mubr.f32.mxu0 0.0
        %871 = vmatmul.mubr.f32.gmra.mrb[0].mxu0 %v751
        %v872 = vpop.f32.mrb[0].mxu0
        %v873 = vadd.f32 %v735, %v872
        %v874 = vpop.f32.mrb[0].mxu0
        %875 = vmatprep.mubr.f32.mxu0 0.0
        %876 = vmatmul.mubr.f32.gmra.mrb[0].mxu0 %v754
        %v877 = vpop.f32.mrb[0].mxu0
        %v878 = vadd.f32 %v735, %v877
        %v879 = vpop.f32.mrb[0].mxu0
        %880 = vmatprep.mubr.f32.mxu0 0.0
        %881 = vmatmul.mubr.f32.gmra.mrb[0].mxu0 %v757
        %v882 = vpop.f32.mrb[0].mxu0
        %v883 = vadd.f32 %v735, %v882
        %v884 = vpop.f32.mrb[0].mxu0
        %885 = vmatprep.mubr.f32.mxu0 0.0
        %886 = vmatmul.mubr.f32.gmra.mrb[0].mxu0 %v760
        %v887 = vpop.f32.mrb[0].mxu0
        %v888 = vadd.f32 %v735, %v887
        %v889 = vpop.f32.mrb[0].mxu0
        %890 = vmatprep.mubr.f32.mxu0 0.0
        %891 = vmatmul.mubr.f32.gmra.mrb[0].mxu0 %v763
        %v892 = vpop.f32.mrb[0].mxu0
        %v893 = vadd.f32 %v735, %v892
        %v894 = vpop.f32.mrb[0].mxu0
        %895 = vmatprep.mubr.f32.mxu0 0.0
        %896 = vmatmul.mubr.f32.gmra.mrb[0].mxu0 %v766
        %v897 = vpop.f32.mrb[0].mxu0
        %v898 = vadd.f32 %v735, %v897
        %v899 = vpop.f32.mrb[0].mxu0
        %900 = vmatprep.mubr.f32.mxu0 0.0
        %901 = vmatmul.mubr.f32.gmra.mrb[0].mxu0 %v769
        %v902 = vpop.f32.mrb[0].mxu0
        %v903 = vadd.f32 %v735, %v902
        %v904 = vpop.f32.mrb[0].mxu0
        %905 = vmatprep.mubr.f32.mxu0 0.0
        %906 = vmatmul.mubr.f32.gmra.mrb[0].mxu0 %v772
        %v907 = vpop.f32.mrb[0].mxu0
        %v908 = vadd.f32 %v735, %v907
        %v909 = vpop.f32.mrb[0].mxu0
        %910 = vmatprep.mubr.f32.mxu0 0.0
        %911 = vmatmul.mubr.f32.gmra.mrb[0].mxu0 %v775
        %v912 = vpop.f32.mrb[0].mxu0
        %v913 = vadd.f32 %v735, %v912
        %v914 = vpop.f32.mrb[0].mxu0
        %915 = vmatprep.mubr.f32.mxu0 0.0
        %916 = vmatmul.mubr.f32.gmra.mrb[0].mxu0 %v778
        %v917 = vpop.f32.mrb[0].mxu0
        %v918 = vadd.f32 %v735, %v917
        %v919 = vpop.f32.mrb[0].mxu0
        %920 = vmatprep.mubr.f32.mxu0 0.0
        %921 = vmatmul.mubr.f32.gmra.mrb[0].mxu0 %v781
        %v922 = vpop.f32.mrb[0].mxu0
        %v923 = vadd.f32 %v735, %v922
        %v924 = vpop.f32.mrb[0].mxu0
        %925 = vmatprep.mubr.f32.mxu0 0.0
        %926 = vmatmul.mubr.f32.gmra.mrb[0].mxu0 %v784
        %v927 = vpop.f32.mrb[0].mxu0
        %v928 = vadd.f32 %v735, %v927
        %v929 = vpop.f32.mrb[0].mxu0
        %930 = vdwg.mxu0
        %947 = vrot.lane.b32.xlu0 %v853, 96
        %v948 = vpop.permute.xlu0 %947
        %949 = vrot.lane.b32.xlu0 %v858, 96
        %v950 = vpop.permute.xlu0 %949
        %951 = vrot.lane.b32.xlu0 %v863, 96
        %v952 = vpop.permute.xlu0 %951
        %953 = vrot.lane.b32.xlu0 %v868, 96
        %v954 = vpop.permute.xlu0 %953
        %955 = vrot.lane.b32.xlu0 %v873, 96
        %v956 = vpop.permute.xlu0 %955
        %957 = vrot.lane.b32.xlu0 %v878, 96
        %v958 = vpop.permute.xlu0 %957
        %959 = vrot.lane.b32.xlu0 %v883, 96
        %v960 = vpop.permute.xlu0 %959
        %961 = vrot.lane.b32.xlu0 %v888, 96
        %v962 = vpop.permute.xlu0 %961
        %963 = vrot.lane.b32.xlu0 %v893, 96
        %v964 = vpop.permute.xlu0 %963
        %965 = vrot.lane.b32.xlu0 %v898, 96
        %v966 = vpop.permute.xlu0 %965
        %967 = vrot.lane.b32.xlu0 %v903, 96
        %v968 = vpop.permute.xlu0 %967
        %969 = vrot.lane.b32.xlu0 %v908, 96
        %v970 = vpop.permute.xlu0 %969
        %971 = vrot.lane.b32.xlu0 %v913, 96
        %v972 = vpop.permute.xlu0 %971
        %973 = vrot.lane.b32.xlu0 %v918, 96
        %v974 = vpop.permute.xlu0 %973
        %975 = vrot.lane.b32.xlu0 %v923, 96
        %v976 = vpop.permute.xlu0 %975
        %977 = vrot.lane.b32.xlu0 %v928, 96
        %v978 = vpop.permute.xlu0 %977
        %v995 = vpack.c.bf16 %v858, %v853
        %v996 = vpack.c.bf16 %v868, %v863
        %v997 = vpack.c.bf16 %v878, %v873
        %v998 = vpack.c.bf16 %v888, %v883
        %v999 = vpack.c.bf16 %v898, %v893
        %v1000 = vpack.c.bf16 %v908, %v903
        %v1001 = vpack.c.bf16 %v918, %v913
        %v1002 = vpack.c.bf16 %v928, %v923
        %v1003 = vpack.c.bf16 %v950, %v948
        %v1004 = vpack.c.bf16 %v954, %v952
        %v1005 = vpack.c.bf16 %v958, %v956
        %v1006 = vpack.c.bf16 %v962, %v960
        %v1007 = vpack.c.bf16 %v966, %v964
        %v1008 = vpack.c.bf16 %v970, %v968
        %v1009 = vpack.c.bf16 %v974, %v972
        %v1010 = vpack.c.bf16 %v978, %v976
        %v1027 = vunpack.c.l.b16 %v506
        %v1028 = vunpack.c.h.b16 %v506
        %v1029 = vunpack.c.l.b16 %v507
        %v1030 = vunpack.c.h.b16 %v507
        %v1031 = vunpack.c.l.b16 %v508
        %v1032 = vunpack.c.h.b16 %v508
        %v1033 = vunpack.c.l.b16 %v509
        %v1034 = vunpack.c.h.b16 %v509
        %v1035 = vunpack.c.l.b16 %v510
        %v1036 = vunpack.c.h.b16 %v510
        %v1037 = vunpack.c.l.b16 %v511
        %v1038 = vunpack.c.h.b16 %v511
        %v1039 = vunpack.c.l.b16 %v512
        %v1040 = vunpack.c.h.b16 %v512
        %v1041 = vunpack.c.l.b16 %v513
        %v1042 = vunpack.c.h.b16 %v513
        %v1043 = vunpack.c.l.b16 %v514
        %v1044 = vunpack.c.h.b16 %v514
        %v1045 = vunpack.c.l.b16 %v515
        %v1046 = vunpack.c.h.b16 %v515
        %v1047 = vunpack.c.l.b16 %v516
        %v1048 = vunpack.c.h.b16 %v516
        %v1049 = vunpack.c.l.b16 %v517
        %v1050 = vunpack.c.h.b16 %v517
        %v1051 = vunpack.c.l.b16 %v518
        %v1052 = vunpack.c.h.b16 %v518
        %v1053 = vunpack.c.l.b16 %v519
        %v1054 = vunpack.c.h.b16 %v519
        %v1055 = vunpack.c.l.b16 %v520
        %v1056 = vunpack.c.h.b16 %v520
        %v1057 = vunpack.c.l.b16 %v521
        %v1058 = vunpack.c.h.b16 %v521
        %v1059 = vpack.c.b16 %v1029, %v1027
        %v1060 = vpack.c.b16 %v1030, %v1028
        %v1061 = vpack.c.b16 %v1033, %v1031
        %v1062 = vpack.c.b16 %v1034, %v1032
        %v1063 = vpack.c.b16 %v1037, %v1035
        %v1064 = vpack.c.b16 %v1038, %v1036
        %v1065 = vpack.c.b16 %v1041, %v1039
        %v1066 = vpack.c.b16 %v1042, %v1040
        %v1067 = vpack.c.b16 %v1045, %v1043
        %v1068 = vpack.c.b16 %v1046, %v1044
        %v1069 = vpack.c.b16 %v1049, %v1047
        %v1070 = vpack.c.b16 %v1050, %v1048
        %v1071 = vpack.c.b16 %v1053, %v1051
        %v1072 = vpack.c.b16 %v1054, %v1052
        %v1073 = vpack.c.b16 %v1057, %v1055
        %v1074 = vpack.c.b16 %v1058, %v1056
        %1107 = vrot.lane.b32.xlu0 %v995, 96
        %v1108 = vpop.permute.xlu0 %1107
        %1109 = vrot.lane.b32.xlu0 %v996, 96
        %v1110 = vpop.permute.xlu0 %1109
        %1111 = vrot.lane.b32.xlu0 %v997, 96
        %v1112 = vpop.permute.xlu0 %1111
        %1113 = vrot.lane.b32.xlu0 %v998, 96
        %v1114 = vpop.permute.xlu0 %1113
        %1115 = vrot.lane.b32.xlu0 %v999, 96
        %v1116 = vpop.permute.xlu0 %1115
        %1117 = vrot.lane.b32.xlu0 %v1000, 96
        %v1118 = vpop.permute.xlu0 %1117
        %1119 = vrot.lane.b32.xlu0 %v1001, 96
        %v1120 = vpop.permute.xlu0 %1119
        %1121 = vrot.lane.b32.xlu0 %v1002, 96
        %v1122 = vpop.permute.xlu0 %1121
        %1123 = vrot.lane.b32.xlu0 %v1003, 96
        %v1124 = vpop.permute.xlu0 %1123
        %1125 = vrot.lane.b32.xlu0 %v1004, 96
        %v1126 = vpop.permute.xlu0 %1125
        %1127 = vrot.lane.b32.xlu0 %v1005, 96
        %v1128 = vpop.permute.xlu0 %1127
        %1129 = vrot.lane.b32.xlu0 %v1006, 96
        %v1130 = vpop.permute.xlu0 %1129
        %1131 = vrot.lane.b32.xlu0 %v1007, 96
        %v1132 = vpop.permute.xlu0 %1131
        %1133 = vrot.lane.b32.xlu0 %v1008, 96
        %v1134 = vpop.permute.xlu0 %1133
        %1135 = vrot.lane.b32.xlu0 %v1009, 96
        %v1136 = vpop.permute.xlu0 %1135
        %1137 = vrot.lane.b32.xlu0 %v1010, 96
        %v1138 = vpop.permute.xlu0 %1137
        %1155 = vmatprep.subr.bf16.mxu0 0
        %1156 = vmatpush1.bf16.msra.mxu0 %v1108
        %1157 = vmatprep.subr.bf16.mxu0 0
        %1158 = vmatpush1.bf16.msra.mxu0 %v1110
        %1159 = vmatprep.subr.bf16.mxu0 0
        %1160 = vmatpush1.bf16.msra.mxu0 %v1112
        %1161 = vmatprep.subr.bf16.mxu0 0
        %1162 = vmatpush1.bf16.msra.mxu0 %v1114
        %1163 = vmatprep.subr.bf16.mxu0 0
        %1164 = vmatpush1.bf16.msra.mxu0 %v1116
        %1165 = vmatprep.subr.bf16.mxu0 0
        %1166 = vmatpush1.bf16.msra.mxu0 %v1118
        %1167 = vmatprep.subr.bf16.mxu0 0
        %1168 = vmatpush1.bf16.msra.mxu0 %v1120
        %1169 = vmatprep.subr.bf16.mxu0 0
        %1170 = vmatpush1.bf16.msra.mxu0 %v1122
        %1171 = vmatprep.subr.bf16.mxu0 0
        %1172 = vmatpush1.bf16.msra.mxu0 %v1124
        %1173 = vmatprep.subr.bf16.mxu0 0
        %1174 = vmatpush1.bf16.msra.mxu0 %v1126
        %1175 = vmatprep.subr.bf16.mxu0 0
        %1176 = vmatpush1.bf16.msra.mxu0 %v1128
        %1177 = vmatprep.subr.bf16.mxu0 0
        %1178 = vmatpush1.bf16.msra.mxu0 %v1130
        %1179 = vmatprep.subr.bf16.mxu0 0
        %1180 = vmatpush1.bf16.msra.mxu0 %v1132
        %1181 = vmatprep.subr.bf16.mxu0 0
        %1182 = vmatpush1.bf16.msra.mxu0 %v1134
        %1183 = vmatprep.subr.bf16.mxu0 0
        %1184 = vmatpush1.bf16.msra.mxu0 %v1136
        %1185 = vmatprep.subr.bf16.mxu0 0
        %1186 = vmatpush1.bf16.msra.mxu0 %v1138
        %1187 = vmatprep.mubr.bf16.mxu0 %v1060
        %1188 = vmatmul.mubr.bf16.gmra.mrb[0].mxu0 %v1059
        %v1189 = vpop.f32.mrb[0].mxu0
        %v1190 = vadd.f32 0.0, %v1189
        %v1191 = vpop.f32.mrb[0].mxu0
        %v1192 = vpop.f32.mrb[0].mxu0
        %v1193 = vadd.f32 0.0, %v1192
        %v1194 = vpop.f32.mrb[0].mxu0
        %1195 = vmatprep.mubr.bf16.mxu0 %v1062
        %1196 = vmatmul.mubr.bf16.gmra.mrb[0].mxu0 %v1061
        %v1197 = vpop.f32.mrb[0].mxu0
        %v1198 = vadd.f32 0.0, %v1197
        %v1199 = vpop.f32.mrb[0].mxu0
        %v1200 = vpop.f32.mrb[0].mxu0
        %v1201 = vadd.f32 0.0, %v1200
        %v1202 = vpop.f32.mrb[0].mxu0
        %1203 = vmatprep.mubr.bf16.mxu0 %v1064
        %1204 = vmatmul.mubr.bf16.gmra.mrb[0].mxu0 %v1063
        %v1205 = vpop.f32.mrb[0].mxu0
        %v1206 = vadd.f32 0.0, %v1205
        %v1207 = vpop.f32.mrb[0].mxu0
        %v1208 = vpop.f32.mrb[0].mxu0
        %v1209 = vadd.f32 0.0, %v1208
        %v1210 = vpop.f32.mrb[0].mxu0
        %1211 = vmatprep.mubr.bf16.mxu0 %v1066
        %1212 = vmatmul.mubr.bf16.gmra.mrb[0].mxu0 %v1065
        %v1213 = vpop.f32.mrb[0].mxu0
        %v1214 = vadd.f32 0.0, %v1213
        %v1215 = vpop.f32.mrb[0].mxu0
        %v1216 = vpop.f32.mrb[0].mxu0
        %v1217 = vadd.f32 0.0, %v1216
        %v1218 = vpop.f32.mrb[0].mxu0
        %1219 = vmatprep.mubr.bf16.mxu0 %v1068
        %1220 = vmatmul.mubr.bf16.gmra.mrb[0].mxu0 %v1067
        %v1221 = vpop.f32.mrb[0].mxu0
        %v1222 = vadd.f32 0.0, %v1221
        %v1223 = vpop.f32.mrb[0].mxu0
        %v1224 = vpop.f32.mrb[0].mxu0
        %v1225 = vadd.f32 0.0, %v1224
        %v1226 = vpop.f32.mrb[0].mxu0
        %1227 = vmatprep.mubr.bf16.mxu0 %v1070
        %1228 = vmatmul.mubr.bf16.gmra.mrb[0].mxu0 %v1069
        %v1229 = vpop.f32.mrb[0].mxu0
        %v1230 = vadd.f32 0.0, %v1229
        %v1231 = vpop.f32.mrb[0].mxu0
        %v1232 = vpop.f32.mrb[0].mxu0
        %v1233 = vadd.f32 0.0, %v1232
        %v1234 = vpop.f32.mrb[0].mxu0
        %1235 = vmatprep.mubr.bf16.mxu0 %v1072
        %1236 = vmatmul.mubr.bf16.gmra.mrb[0].mxu0 %v1071
        %v1237 = vpop.f32.mrb[0].mxu0
        %v1238 = vadd.f32 0.0, %v1237
        %v1239 = vpop.f32.mrb[0].mxu0
        %v1240 = vpop.f32.mrb[0].mxu0
        %v1241 = vadd.f32 0.0, %v1240
        %v1242 = vpop.f32.mrb[0].mxu0
        %1243 = vmatprep.mubr.bf16.mxu0 %v1074
        %1244 = vmatmul.mubr.bf16.gmra.mrb[0].mxu0 %v1073
        %v1245 = vpop.f32.mrb[0].mxu0
        %v1246 = vadd.f32 0.0, %v1245
        %v1247 = vpop.f32.mrb[0].mxu0
        %v1248 = vpop.f32.mrb[0].mxu0
        %v1249 = vadd.f32 0.0, %v1248
        %v1250 = vpop.f32.mrb[0].mxu0
        %1251 = vdwg.mxu0
        %v1252 = vadd.f32 %v853, %v1190
        %v1253 = vadd.f32 %v858, %v1193
        %v1254 = vadd.f32 %v863, %v1198
        %v1255 = vadd.f32 %v868, %v1201
        %v1256 = vadd.f32 %v873, %v1206
        %v1257 = vadd.f32 %v878, %v1209
        %v1258 = vadd.f32 %v883, %v1214
        %v1259 = vadd.f32 %v888, %v1217
        %v1260 = vadd.f32 %v893, %v1222
        %v1261 = vadd.f32 %v898, %v1225
        %v1262 = vadd.f32 %v903, %v1230
        %v1263 = vadd.f32 %v908, %v1233
        %v1264 = vadd.f32 %v913, %v1238
        %v1265 = vadd.f32 %v918, %v1241
        %v1266 = vadd.f32 %v923, %v1246
        %v1267 = vadd.f32 %v928, %v1249
        %vm1268 = vcmp.gt.f32.partialorder %v1252, 0.0
        %vm1269 = vcmp.gt.f32.partialorder %v1253, 0.0
        %vm1270 = vcmp.gt.f32.partialorder %v1254, 0.0
        %vm1271 = vcmp.gt.f32.partialorder %v1255, 0.0
        %vm1272 = vcmp.gt.f32.partialorder %v1256, 0.0
        %vm1273 = vcmp.gt.f32.partialorder %v1257, 0.0
        %vm1274 = vcmp.gt.f32.partialorder %v1258, 0.0
        %vm1275 = vcmp.gt.f32.partialorder %v1259, 0.0
        %vm1276 = vcmp.gt.f32.partialorder %v1260, 0.0
        %vm1277 = vcmp.gt.f32.partialorder %v1261, 0.0
        %vm1278 = vcmp.gt.f32.partialorder %v1262, 0.0
        %vm1279 = vcmp.gt.f32.partialorder %v1263, 0.0
        %vm1280 = vcmp.gt.f32.partialorder %v1264, 0.0
        %vm1281 = vcmp.gt.f32.partialorder %v1265, 0.0
        %vm1282 = vcmp.gt.f32.partialorder %v1266, 0.0
        %vm1283 = vcmp.gt.f32.partialorder %v1267, 0.0
        %v1284 = vmul.f32 %v1252, 0.01
        %v1285 = vmul.f32 %v1253, 0.01
        %v1286 = vmul.f32 %v1254, 0.01
        %v1287 = vmul.f32 %v1255, 0.01
        %v1288 = vmul.f32 %v1256, 0.01
        %v1289 = vmul.f32 %v1257, 0.01
        %v1290 = vmul.f32 %v1258, 0.01
        %v1291 = vmul.f32 %v1259, 0.01
        %v1292 = vmul.f32 %v1260, 0.01
        %v1293 = vmul.f32 %v1261, 0.01
        %v1294 = vmul.f32 %v1262, 0.01
        %v1295 = vmul.f32 %v1263, 0.01
        %v1296 = vmul.f32 %v1264, 0.01
        %v1297 = vmul.f32 %v1265, 0.01
        %v1298 = vmul.f32 %v1266, 0.01
        %v1299 = vmul.f32 %v1267, 0.01
        %v1300 = vsel %vm1268, %v1252, %v1284
        %v1301 = vsel %vm1269, %v1253, %v1285
        %v1302 = vsel %vm1270, %v1254, %v1286
        %v1303 = vsel %vm1271, %v1255, %v1287
        %v1304 = vsel %vm1272, %v1256, %v1288
        %v1305 = vsel %vm1273, %v1257, %v1289
        %v1306 = vsel %vm1274, %v1258, %v1290
        %v1307 = vsel %vm1275, %v1259, %v1291
        %v1308 = vsel %vm1276, %v1260, %v1292
        %v1309 = vsel %vm1277, %v1261, %v1293
        %v1310 = vsel %vm1278, %v1262, %v1294
        %v1311 = vsel %vm1279, %v1263, %v1295
        %v1312 = vsel %vm1280, %v1264, %v1296
        %v1313 = vsel %vm1281, %v1265, %v1297
        %v1314 = vsel %vm1282, %v1266, %v1298
        %v1315 = vsel %vm1283, %v1267, %v1299
        %s1316 = scalar_lea.vmem [#allocation8], 32
        %v1317 = vld [vmem:[%s1316] sm:$0xff]
        %v1318 = vld [vmem:[%s1316 + $0x8] sm:$0xff]
        %v1319 = vld [vmem:[%s1316 + $0x10] sm:$0xff]
        %v1320 = vld [vmem:[%s1316 + $0x18] sm:$0xff]
        %s1321 = scalar_lea.vmem %s6, 1
        %v1322 = vld [vmem:[%s1321] sm:$0x1]
        %v1324 = vlaneseq
        %v1325 = vshrl.u32 %v1324, 7
        %v1326 = vsub.s32 0, %v1325
        %v1327 = vrot.slane %v1322, %v1326
        %v1330 = vsel %vm737, %v1300, 0
        %v1333 = vsel %vm737, %v1301, 0
        %v1336 = vsel %vm737, %v1302, 0
        %v1339 = vsel %vm737, %v1303, 0
        %v1342 = vsel %vm737, %v1304, 0
        %v1345 = vsel %vm737, %v1305, 0
        %v1348 = vsel %vm737, %v1306, 0
        %v1351 = vsel %vm737, %v1307, 0
        %v1354 = vsel %vm737, %v1308, 0
        %v1357 = vsel %vm737, %v1309, 0
        %v1360 = vsel %vm737, %v1310, 0
        %v1363 = vsel %vm737, %v1311, 0
        %v1366 = vsel %vm737, %v1312, 0
        %v1369 = vsel %vm737, %v1313, 0
        %v1372 = vsel %vm737, %v1314, 0
        %v1375 = vsel %vm737, %v1315, 0
        %1377 = vmatprep.subr.mxu0 0.0
        %1378 = vmatpush1.msra.mxu0 %v1317
        %1379 = vmatprep.subr.mxu0 0.0
        %1380 = vmatpush1.msra.mxu0 %v1318
        %1381 = vmatprep.subr.mxu0 0.0
        %1382 = vmatpush1.msra.mxu0 %v1319
        %1383 = vmatprep.subr.mxu0 0.0
        %1384 = vmatpush1.msra.mxu0 %v1320
        %1385 = vmatprep.subr.mxu0 0.0
        %1386 = vmatpush1.msra.mxu0 0.0
        %1387 = vmatprep.subr.mxu0 0.0
        %1388 = vmatpush1.msra.mxu0 0.0
        %1389 = vmatprep.subr.mxu0 0.0
        %1390 = vmatpush1.msra.mxu0 0.0
        %1391 = vmatprep.subr.mxu0 0.0
        %1392 = vmatpush1.msra.mxu0 0.0
        %1393 = vmatprep.subr.mxu0 0.0
        %1394 = vmatpush1.msra.mxu0 0.0
        %1395 = vmatprep.subr.mxu0 0.0
        %1396 = vmatpush1.msra.mxu0 0.0
        %1397 = vmatprep.subr.mxu0 0.0
        %1398 = vmatpush1.msra.mxu0 0.0
        %1399 = vmatprep.subr.mxu0 0.0
        %1400 = vmatpush1.msra.mxu0 0.0
        %1401 = vmatprep.subr.mxu0 0.0
        %1402 = vmatpush1.msra.mxu0 0.0
        %1403 = vmatprep.subr.mxu0 0.0
        %1404 = vmatpush1.msra.mxu0 0.0
        %1405 = vmatprep.subr.mxu0 0.0
        %1406 = vmatpush1.msra.mxu0 0.0
        %1407 = vmatprep.subr.mxu0 0.0
        %1408 = vmatpush1.msra.mxu0 0.0
        %1409 = vmatprep.subr.mxu0 0.0
        %1410 = vmatpush1.msra.mxu0 0.0
        %1411 = vmatprep.subr.mxu0 0.0
        %1412 = vmatpush1.msra.mxu0 0.0
        %1413 = vmatprep.subr.mxu0 0.0
        %1414 = vmatpush1.msra.mxu0 0.0
        %1415 = vmatprep.subr.mxu0 0.0
        %1416 = vmatpush1.msra.mxu0 0.0
        %1417 = vmatprep.subr.mxu0 0.0
        %1418 = vmatpush1.msra.mxu0 0.0
        %1419 = vmatprep.subr.mxu0 0.0
        %1420 = vmatpush1.msra.mxu0 0.0
        %1421 = vmatprep.subr.mxu0 0.0
        %1422 = vmatpush1.msra.mxu0 0.0
        %1423 = vmatprep.subr.mxu0 0.0
        %1424 = vmatpush1.msra.mxu0 0.0
        %1425 = vmatprep.subr.mxu0 0.0
        %1426 = vmatpush1.msra.mxu0 0.0
        %1427 = vmatprep.subr.mxu0 0.0
        %1428 = vmatpush1.msra.mxu0 0.0
        %1429 = vmatprep.subr.mxu0 0.0
        %1430 = vmatpush1.msra.mxu0 0.0
        %1431 = vmatprep.subr.mxu0 0.0
        %1432 = vmatpush1.msra.mxu0 0.0
        %1433 = vmatprep.subr.mxu0 0.0
        %1434 = vmatpush1.msra.mxu0 0.0
        %1435 = vmatprep.subr.mxu0 0.0
        %1436 = vmatpush1.msra.mxu0 0.0
        %1437 = vmatprep.subr.mxu0 0.0
        %1438 = vmatpush1.msra.mxu0 0.0
        %1439 = vmatprep.subr.mxu0 0.0
        %1440 = vmatpush1.msra.mxu0 0.0
        %1441 = vmatprep.mubr.f32.mxu0 0.0
        %1442 = vmatmul.mubr.f32.gmra.mrb[0].mxu0 %v1330
        %v1443 = vpop.f32.mrb[0].mxu0
        %v1444 = vadd.f32 %v1327, %v1443
        %v1445 = vpop.f32.mrb[0].mxu0
        %1446 = vmatprep.mubr.f32.mxu0 0.0
        %1447 = vmatmul.mubr.f32.gmra.mrb[0].mxu0 %v1333
        %v1448 = vpop.f32.mrb[0].mxu0
        %v1449 = vadd.f32 %v1327, %v1448
        %v1450 = vpop.f32.mrb[0].mxu0
        %1451 = vmatprep.mubr.f32.mxu0 0.0
        %1452 = vmatmul.mubr.f32.gmra.mrb[0].mxu0 %v1336
        %v1453 = vpop.f32.mrb[0].mxu0
        %v1454 = vadd.f32 %v1327, %v1453
        %v1455 = vpop.f32.mrb[0].mxu0
        %1456 = vmatprep.mubr.f32.mxu0 0.0
        %1457 = vmatmul.mubr.f32.gmra.mrb[0].mxu0 %v1339
        %v1458 = vpop.f32.mrb[0].mxu0
        %v1459 = vadd.f32 %v1327, %v1458
        %v1460 = vpop.f32.mrb[0].mxu0
        %1461 = vmatprep.mubr.f32.mxu0 0.0
        %1462 = vmatmul.mubr.f32.gmra.mrb[0].mxu0 %v1342
        %v1463 = vpop.f32.mrb[0].mxu0
        %v1464 = vadd.f32 %v1327, %v1463
        %v1465 = vpop.f32.mrb[0].mxu0
        %1466 = vmatprep.mubr.f32.mxu0 0.0
        %1467 = vmatmul.mubr.f32.gmra.mrb[0].mxu0 %v1345
        %v1468 = vpop.f32.mrb[0].mxu0
        %v1469 = vadd.f32 %v1327, %v1468
        %v1470 = vpop.f32.mrb[0].mxu0
        %1471 = vmatprep.mubr.f32.mxu0 0.0
        %1472 = vmatmul.mubr.f32.gmra.mrb[0].mxu0 %v1348
        %v1473 = vpop.f32.mrb[0].mxu0
        %v1474 = vadd.f32 %v1327, %v1473
        %v1475 = vpop.f32.mrb[0].mxu0
        %1476 = vmatprep.mubr.f32.mxu0 0.0
        %1477 = vmatmul.mubr.f32.gmra.mrb[0].mxu0 %v1351
        %v1478 = vpop.f32.mrb[0].mxu0
        %v1479 = vadd.f32 %v1327, %v1478
        %v1480 = vpop.f32.mrb[0].mxu0
        %1481 = vmatprep.mubr.f32.mxu0 0.0
        %1482 = vmatmul.mubr.f32.gmra.mrb[0].mxu0 %v1354
        %v1483 = vpop.f32.mrb[0].mxu0
        %v1484 = vadd.f32 %v1327, %v1483
        %v1485 = vpop.f32.mrb[0].mxu0
        %1486 = vmatprep.mubr.f32.mxu0 0.0
        %1487 = vmatmul.mubr.f32.gmra.mrb[0].mxu0 %v1357
        %v1488 = vpop.f32.mrb[0].mxu0
        %v1489 = vadd.f32 %v1327, %v1488
        %v1490 = vpop.f32.mrb[0].mxu0
        %1491 = vmatprep.mubr.f32.mxu0 0.0
        %1492 = vmatmul.mubr.f32.gmra.mrb[0].mxu0 %v1360
        %v1493 = vpop.f32.mrb[0].mxu0
        %v1494 = vadd.f32 %v1327, %v1493
        %v1495 = vpop.f32.mrb[0].mxu0
        %1496 = vmatprep.mubr.f32.mxu0 0.0
        %1497 = vmatmul.mubr.f32.gmra.mrb[0].mxu0 %v1363
        %v1498 = vpop.f32.mrb[0].mxu0
        %v1499 = vadd.f32 %v1327, %v1498
        %v1500 = vpop.f32.mrb[0].mxu0
        %1501 = vmatprep.mubr.f32.mxu0 0.0
        %1502 = vmatmul.mubr.f32.gmra.mrb[0].mxu0 %v1366
        %v1503 = vpop.f32.mrb[0].mxu0
        %v1504 = vadd.f32 %v1327, %v1503
        %v1505 = vpop.f32.mrb[0].mxu0
        %1506 = vmatprep.mubr.f32.mxu0 0.0
        %1507 = vmatmul.mubr.f32.gmra.mrb[0].mxu0 %v1369
        %v1508 = vpop.f32.mrb[0].mxu0
        %v1509 = vadd.f32 %v1327, %v1508
        %v1510 = vpop.f32.mrb[0].mxu0
        %1511 = vmatprep.mubr.f32.mxu0 0.0
        %1512 = vmatmul.mubr.f32.gmra.mrb[0].mxu0 %v1372
        %v1513 = vpop.f32.mrb[0].mxu0
        %v1514 = vadd.f32 %v1327, %v1513
        %v1515 = vpop.f32.mrb[0].mxu0
        %1516 = vmatprep.mubr.f32.mxu0 0.0
        %1517 = vmatmul.mubr.f32.gmra.mrb[0].mxu0 %v1375
        %v1518 = vpop.f32.mrb[0].mxu0
        %v1519 = vadd.f32 %v1327, %v1518
        %v1520 = vpop.f32.mrb[0].mxu0
        %1521 = vdwg.mxu0
        %1538 = vrot.lane.b32.xlu0 %v1444, 96
        %v1539 = vpop.permute.xlu0 %1538
        %1540 = vrot.lane.b32.xlu0 %v1449, 96
        %v1541 = vpop.permute.xlu0 %1540
        %1542 = vrot.lane.b32.xlu0 %v1454, 96
        %v1543 = vpop.permute.xlu0 %1542
        %1544 = vrot.lane.b32.xlu0 %v1459, 96
        %v1545 = vpop.permute.xlu0 %1544
        %1546 = vrot.lane.b32.xlu0 %v1464, 96
        %v1547 = vpop.permute.xlu0 %1546
        %1548 = vrot.lane.b32.xlu0 %v1469, 96
        %v1549 = vpop.permute.xlu0 %1548
        %1550 = vrot.lane.b32.xlu0 %v1474, 96
        %v1551 = vpop.permute.xlu0 %1550
        %1552 = vrot.lane.b32.xlu0 %v1479, 96
        %v1553 = vpop.permute.xlu0 %1552
        %1554 = vrot.lane.b32.xlu0 %v1484, 96
        %v1555 = vpop.permute.xlu0 %1554
        %1556 = vrot.lane.b32.xlu0 %v1489, 96
        %v1557 = vpop.permute.xlu0 %1556
        %1558 = vrot.lane.b32.xlu0 %v1494, 96
        %v1559 = vpop.permute.xlu0 %1558
        %1560 = vrot.lane.b32.xlu0 %v1499, 96
        %v1561 = vpop.permute.xlu0 %1560
        %1562 = vrot.lane.b32.xlu0 %v1504, 96
        %v1563 = vpop.permute.xlu0 %1562
        %1564 = vrot.lane.b32.xlu0 %v1509, 96
        %v1565 = vpop.permute.xlu0 %1564
        %1566 = vrot.lane.b32.xlu0 %v1514, 96
        %v1567 = vpop.permute.xlu0 %1566
        %1568 = vrot.lane.b32.xlu0 %v1519, 96
        %v1569 = vpop.permute.xlu0 %1568
        %v1586 = vpack.c.bf16 %v1449, %v1444
        %v1587 = vpack.c.bf16 %v1459, %v1454
        %v1588 = vpack.c.bf16 %v1469, %v1464
        %v1589 = vpack.c.bf16 %v1479, %v1474
        %v1590 = vpack.c.bf16 %v1489, %v1484
        %v1591 = vpack.c.bf16 %v1499, %v1494
        %v1592 = vpack.c.bf16 %v1509, %v1504
        %v1593 = vpack.c.bf16 %v1519, %v1514
        %v1594 = vpack.c.bf16 %v1541, %v1539
        %v1595 = vpack.c.bf16 %v1545, %v1543
        %v1596 = vpack.c.bf16 %v1549, %v1547
        %v1597 = vpack.c.bf16 %v1553, %v1551
        %v1598 = vpack.c.bf16 %v1557, %v1555
        %v1599 = vpack.c.bf16 %v1561, %v1559
        %v1600 = vpack.c.bf16 %v1565, %v1563
        %v1601 = vpack.c.bf16 %v1569, %v1567
        %1618 = vrot.lane.b32.xlu0 %v1586, 96
        %v1619 = vpop.permute.xlu0 %1618
        %1620 = vrot.lane.b32.xlu0 %v1587, 96
        %v1621 = vpop.permute.xlu0 %1620
        %1622 = vrot.lane.b32.xlu0 %v1588, 96
        %v1623 = vpop.permute.xlu0 %1622
        %1624 = vrot.lane.b32.xlu0 %v1589, 96
        %v1625 = vpop.permute.xlu0 %1624
        %1626 = vrot.lane.b32.xlu0 %v1590, 96
        %v1627 = vpop.permute.xlu0 %1626
        %1628 = vrot.lane.b32.xlu0 %v1591, 96
        %v1629 = vpop.permute.xlu0 %1628
        %1630 = vrot.lane.b32.xlu0 %v1592, 96
        %v1631 = vpop.permute.xlu0 %1630
        %1632 = vrot.lane.b32.xlu0 %v1593, 96
        %v1633 = vpop.permute.xlu0 %1632
        %1634 = vrot.lane.b32.xlu0 %v1594, 96
        %v1635 = vpop.permute.xlu0 %1634
        %1636 = vrot.lane.b32.xlu0 %v1595, 96
        %v1637 = vpop.permute.xlu0 %1636
        %1638 = vrot.lane.b32.xlu0 %v1596, 96
        %v1639 = vpop.permute.xlu0 %1638
        %1640 = vrot.lane.b32.xlu0 %v1597, 96
        %v1641 = vpop.permute.xlu0 %1640
        %1642 = vrot.lane.b32.xlu0 %v1598, 96
        %v1643 = vpop.permute.xlu0 %1642
        %1644 = vrot.lane.b32.xlu0 %v1599, 96
        %v1645 = vpop.permute.xlu0 %1644
        %1646 = vrot.lane.b32.xlu0 %v1600, 96
        %v1647 = vpop.permute.xlu0 %1646
        %1648 = vrot.lane.b32.xlu0 %v1601, 96
        %v1649 = vpop.permute.xlu0 %1648
        %1666 = vmatprep.subr.bf16.mxu0 0
        %1667 = vmatpush1.bf16.msra.mxu0 %v1619
        %1668 = vmatprep.subr.bf16.mxu0 0
        %1669 = vmatpush1.bf16.msra.mxu0 %v1621
        %1670 = vmatprep.subr.bf16.mxu0 0
        %1671 = vmatpush1.bf16.msra.mxu0 %v1623
        %1672 = vmatprep.subr.bf16.mxu0 0
        %1673 = vmatpush1.bf16.msra.mxu0 %v1625
        %1674 = vmatprep.subr.bf16.mxu0 0
        %1675 = vmatpush1.bf16.msra.mxu0 %v1627
        %1676 = vmatprep.subr.bf16.mxu0 0
        %1677 = vmatpush1.bf16.msra.mxu0 %v1629
        %1678 = vmatprep.subr.bf16.mxu0 0
        %1679 = vmatpush1.bf16.msra.mxu0 %v1631
        %1680 = vmatprep.subr.bf16.mxu0 0
        %1681 = vmatpush1.bf16.msra.mxu0 %v1633
        %1682 = vmatprep.subr.bf16.mxu0 0
        %1683 = vmatpush1.bf16.msra.mxu0 %v1635
        %1684 = vmatprep.subr.bf16.mxu0 0
        %1685 = vmatpush1.bf16.msra.mxu0 %v1637
        %1686 = vmatprep.subr.bf16.mxu0 0
        %1687 = vmatpush1.bf16.msra.mxu0 %v1639
        %1688 = vmatprep.subr.bf16.mxu0 0
        %1689 = vmatpush1.bf16.msra.mxu0 %v1641
        %1690 = vmatprep.subr.bf16.mxu0 0
        %1691 = vmatpush1.bf16.msra.mxu0 %v1643
        %1692 = vmatprep.subr.bf16.mxu0 0
        %1693 = vmatpush1.bf16.msra.mxu0 %v1645
        %1694 = vmatprep.subr.bf16.mxu0 0
        %1695 = vmatpush1.bf16.msra.mxu0 %v1647
        %1696 = vmatprep.subr.bf16.mxu0 0
        %1697 = vmatpush1.bf16.msra.mxu0 %v1649
        %1698 = vmatprep.mubr.bf16.mxu0 %v1060
        %1699 = vmatmul.mubr.bf16.gmra.mrb[0].mxu0 %v1059
        %v1700 = vpop.f32.mrb[0].mxu0
        %v1701 = vadd.f32 0.0, %v1700
        %v1702 = vpop.f32.mrb[0].mxu0
        %v1703 = vpop.f32.mrb[0].mxu0
        %v1704 = vadd.f32 0.0, %v1703
        %v1705 = vpop.f32.mrb[0].mxu0
        %1706 = vmatprep.mubr.bf16.mxu0 %v1062
        %1707 = vmatmul.mubr.bf16.gmra.mrb[0].mxu0 %v1061
        %v1708 = vpop.f32.mrb[0].mxu0
        %v1709 = vadd.f32 0.0, %v1708
        %v1710 = vpop.f32.mrb[0].mxu0
        %v1711 = vpop.f32.mrb[0].mxu0
        %v1712 = vadd.f32 0.0, %v1711
        %v1713 = vpop.f32.mrb[0].mxu0
        %1714 = vmatprep.mubr.bf16.mxu0 %v1064
        %1715 = vmatmul.mubr.bf16.gmra.mrb[0].mxu0 %v1063
        %v1716 = vpop.f32.mrb[0].mxu0
        %v1717 = vadd.f32 0.0, %v1716
        %v1718 = vpop.f32.mrb[0].mxu0
        %v1719 = vpop.f32.mrb[0].mxu0
        %v1720 = vadd.f32 0.0, %v1719
        %v1721 = vpop.f32.mrb[0].mxu0
        %1722 = vmatprep.mubr.bf16.mxu0 %v1066
        %1723 = vmatmul.mubr.bf16.gmra.mrb[0].mxu0 %v1065
        %v1724 = vpop.f32.mrb[0].mxu0
        %v1725 = vadd.f32 0.0, %v1724
        %v1726 = vpop.f32.mrb[0].mxu0
        %v1727 = vpop.f32.mrb[0].mxu0
        %v1728 = vadd.f32 0.0, %v1727
        %v1729 = vpop.f32.mrb[0].mxu0
        %1730 = vmatprep.mubr.bf16.mxu0 %v1068
        %1731 = vmatmul.mubr.bf16.gmra.mrb[0].mxu0 %v1067
        %v1732 = vpop.f32.mrb[0].mxu0
        %v1733 = vadd.f32 0.0, %v1732
        %v1734 = vpop.f32.mrb[0].mxu0
        %v1735 = vpop.f32.mrb[0].mxu0
        %v1736 = vadd.f32 0.0, %v1735
        %v1737 = vpop.f32.mrb[0].mxu0
        %1738 = vmatprep.mubr.bf16.mxu0 %v1070
        %1739 = vmatmul.mubr.bf16.gmra.mrb[0].mxu0 %v1069
        %v1740 = vpop.f32.mrb[0].mxu0
        %v1741 = vadd.f32 0.0, %v1740
        %v1742 = vpop.f32.mrb[0].mxu0
        %v1743 = vpop.f32.mrb[0].mxu0
        %v1744 = vadd.f32 0.0, %v1743
        %v1745 = vpop.f32.mrb[0].mxu0
        %1746 = vmatprep.mubr.bf16.mxu0 %v1072
        %1747 = vmatmul.mubr.bf16.gmra.mrb[0].mxu0 %v1071
        %v1748 = vpop.f32.mrb[0].mxu0
        %v1749 = vadd.f32 0.0, %v1748
        %v1750 = vpop.f32.mrb[0].mxu0
        %v1751 = vpop.f32.mrb[0].mxu0
        %v1752 = vadd.f32 0.0, %v1751
        %v1753 = vpop.f32.mrb[0].mxu0
        %1754 = vmatprep.mubr.bf16.mxu0 %v1074
        %1755 = vmatmul.mubr.bf16.gmra.mrb[0].mxu0 %v1073
        %v1756 = vpop.f32.mrb[0].mxu0
        %v1757 = vadd.f32 0.0, %v1756
        %v1758 = vpop.f32.mrb[0].mxu0
        %v1759 = vpop.f32.mrb[0].mxu0
        %v1760 = vadd.f32 0.0, %v1759
        %v1761 = vpop.f32.mrb[0].mxu0
        %1762 = vdwg.mxu0
        %v1763 = vadd.f32 %v1444, %v1701
        %v1764 = vadd.f32 %v1449, %v1704
        %v1765 = vadd.f32 %v1454, %v1709
        %v1766 = vadd.f32 %v1459, %v1712
        %v1767 = vadd.f32 %v1464, %v1717
        %v1768 = vadd.f32 %v1469, %v1720
        %v1769 = vadd.f32 %v1474, %v1725
        %v1770 = vadd.f32 %v1479, %v1728
        %v1771 = vadd.f32 %v1484, %v1733
        %v1772 = vadd.f32 %v1489, %v1736
        %v1773 = vadd.f32 %v1494, %v1741
        %v1774 = vadd.f32 %v1499, %v1744
        %v1775 = vadd.f32 %v1504, %v1749
        %v1776 = vadd.f32 %v1509, %v1752
        %v1777 = vadd.f32 %v1514, %v1757
        %v1778 = vadd.f32 %v1519, %v1760
        %vm1779 = vcmp.gt.f32.partialorder %v1763, 0.0
        %vm1780 = vcmp.gt.f32.partialorder %v1764, 0.0
        %vm1781 = vcmp.gt.f32.partialorder %v1765, 0.0
        %vm1782 = vcmp.gt.f32.partialorder %v1766, 0.0
        %vm1783 = vcmp.gt.f32.partialorder %v1767, 0.0
        %vm1784 = vcmp.gt.f32.partialorder %v1768, 0.0
        %vm1785 = vcmp.gt.f32.partialorder %v1769, 0.0
        %vm1786 = vcmp.gt.f32.partialorder %v1770, 0.0
        %vm1787 = vcmp.gt.f32.partialorder %v1771, 0.0
        %vm1788 = vcmp.gt.f32.partialorder %v1772, 0.0
        %vm1789 = vcmp.gt.f32.partialorder %v1773, 0.0
        %vm1790 = vcmp.gt.f32.partialorder %v1774, 0.0
        %vm1791 = vcmp.gt.f32.partialorder %v1775, 0.0
        %vm1792 = vcmp.gt.f32.partialorder %v1776, 0.0
        %vm1793 = vcmp.gt.f32.partialorder %v1777, 0.0
        %vm1794 = vcmp.gt.f32.partialorder %v1778, 0.0
        %v1795 = vmul.f32 %v1763, 0.01
        %v1796 = vmul.f32 %v1764, 0.01
        %v1797 = vmul.f32 %v1765, 0.01
        %v1798 = vmul.f32 %v1766, 0.01
        %v1799 = vmul.f32 %v1767, 0.01
        %v1800 = vmul.f32 %v1768, 0.01
        %v1801 = vmul.f32 %v1769, 0.01
        %v1802 = vmul.f32 %v1770, 0.01
        %v1803 = vmul.f32 %v1771, 0.01
        %v1804 = vmul.f32 %v1772, 0.01
        %v1805 = vmul.f32 %v1773, 0.01
        %v1806 = vmul.f32 %v1774, 0.01
        %v1807 = vmul.f32 %v1775, 0.01
        %v1808 = vmul.f32 %v1776, 0.01
        %v1809 = vmul.f32 %v1777, 0.01
        %v1810 = vmul.f32 %v1778, 0.01
        %v1811 = vsel %vm1779, %v1763, %v1795
        %v1812 = vsel %vm1780, %v1764, %v1796
        %v1813 = vsel %vm1781, %v1765, %v1797
        %v1814 = vsel %vm1782, %v1766, %v1798
        %v1815 = vsel %vm1783, %v1767, %v1799
        %v1816 = vsel %vm1784, %v1768, %v1800
        %v1817 = vsel %vm1785, %v1769, %v1801
        %v1818 = vsel %vm1786, %v1770, %v1802
        %v1819 = vsel %vm1787, %v1771, %v1803
        %v1820 = vsel %vm1788, %v1772, %v1804
        %v1821 = vsel %vm1789, %v1773, %v1805
        %v1822 = vsel %vm1790, %v1774, %v1806
        %v1823 = vsel %vm1791, %v1775, %v1807
        %v1824 = vsel %vm1792, %v1776, %v1808
        %v1825 = vsel %vm1793, %v1777, %v1809
        %v1826 = vsel %vm1794, %v1778, %v1810
        %1827 = vmatprep.subr.mxu0 0.0
        %1828 = vmatpush1.msra.mxu0 %v1811
        %1829 = vmatprep.subr.mxu0 0.0
        %1830 = vmatpush1.msra.mxu0 %v1812
        %1831 = vmatprep.subr.mxu0 0.0
        %1832 = vmatpush1.msra.mxu0 %v1813
        %1833 = vmatprep.subr.mxu0 0.0
        %1834 = vmatpush1.msra.mxu0 %v1814
        %1835 = vmatprep.subr.mxu0 0.0
        %1836 = vmatpush1.msra.mxu0 %v1815
        %1837 = vmatprep.subr.mxu0 0.0
        %1838 = vmatpush1.msra.mxu0 %v1816
        %1839 = vmatprep.subr.mxu0 0.0
        %1840 = vmatpush1.msra.mxu0 %v1817
        %1841 = vmatprep.subr.mxu0 0.0
        %1842 = vmatpush1.msra.mxu0 %v1818
        %1843 = vmatprep.subr.mxu0 0.0
        %1844 = vmatpush1.msra.mxu0 %v1819
        %1845 = vmatprep.subr.mxu0 0.0
        %1846 = vmatpush1.msra.mxu0 %v1820
        %1847 = vmatprep.subr.mxu0 0.0
        %1848 = vmatpush1.msra.mxu0 %v1821
        %1849 = vmatprep.subr.mxu0 0.0
        %1850 = vmatpush1.msra.mxu0 %v1822
        %1851 = vmatprep.subr.mxu0 0.0
        %1852 = vmatpush1.msra.mxu0 %v1823
        %1853 = vmatprep.subr.mxu0 0.0
        %1854 = vmatpush1.msra.mxu0 %v1824
        %1855 = vmatprep.subr.mxu0 0.0
        %1856 = vmatpush1.msra.mxu0 %v1825
        %1857 = vmatprep.subr.mxu0 0.0
        %1858 = vmatpush1.msra.mxu0 %v1826
        %1859 = vmatprep.subr.mxu0 0.0
        %1860 = vmatpush1.msra.mxu0 0.0
        %1861 = vmatprep.subr.mxu0 0.0
        %1862 = vmatpush1.msra.mxu0 0.0
        %1863 = vmatprep.subr.mxu0 0.0
        %1864 = vmatpush1.msra.mxu0 0.0
        %1865 = vmatprep.subr.mxu0 0.0
        %1866 = vmatpush1.msra.mxu0 0.0
        %1867 = vmatprep.subr.mxu0 0.0
        %1868 = vmatpush1.msra.mxu0 0.0
        %1869 = vmatprep.subr.mxu0 0.0
        %1870 = vmatpush1.msra.mxu0 0.0
        %1871 = vmatprep.subr.mxu0 0.0
        %1872 = vmatpush1.msra.mxu0 0.0
        %1873 = vmatprep.subr.mxu0 0.0
        %1874 = vmatpush1.msra.mxu0 0.0
        %1875 = vmatprep.subr.mxu0 0.0
        %1876 = vmatpush1.msra.mxu0 0.0
        %1877 = vmatprep.subr.mxu0 0.0
        %1878 = vmatpush1.msra.mxu0 0.0
        %1879 = vmatprep.subr.mxu0 0.0
        %1880 = vmatpush1.msra.mxu0 0.0
        %1881 = vmatprep.subr.mxu0 0.0
        %1882 = vmatpush1.msra.mxu0 0.0
        %1883 = vmatprep.subr.mxu0 0.0
        %1884 = vmatpush1.msra.mxu0 0.0
        %1885 = vmatprep.subr.mxu0 0.0
        %1886 = vmatpush1.msra.mxu0 0.0
        %1887 = vmatprep.subr.mxu0 0.0
        %1888 = vmatpush1.msra.mxu0 0.0
        %1889 = vmatprep.subr.mxu0 0.0
        %1890 = vmatpush1.msra.mxu0 0.0
        %1891 = vmatprep.mubr.f32.mxu0 0.0
        %1892 = vmatmul.mubr.f32.gmra.mrb[0].mxu0 %v522
        %v1893 = vpop.f32.mrb[0].mxu0
        %v1894 = vadd.f32 0.0, %v1893
        %v1895 = vpop.f32.mrb[0].mxu0
        %1896 = vmatprep.mubr.f32.mxu0 0.0
        %1897 = vmatmul.mubr.f32.gmra.mrb[0].mxu0 %v523
        %v1898 = vpop.f32.mrb[0].mxu0
        %v1899 = vadd.f32 0.0, %v1898
        %v1900 = vpop.f32.mrb[0].mxu0
        %1901 = vdwg.mxu0
        %v1902 = vld [vmem:[%s7] sm:$0xff]
        %v1903 = vld [vmem:[%s7 + $0x8] sm:$0xff]
        %v1904 = vld [vmem:[%s7 + $0x10] sm:$0xff]
        %v1905 = vld [vmem:[%s7 + $0x18] sm:$0xff]
        %v1906 = vld [vmem:[%s8] sm:$0x1]
        %v1908 = vlaneseq
        %v1909 = vshrl.u32 %v1908, 7
        %v1910 = vsub.s32 0, %v1909
        %v1911 = vrot.slane %v1906, %v1910
        %v1914 = vsel %vm737, %v1894, 0
        %v1917 = vsel %vm737, %v1899, 0
        %1919 = vmatprep.subr.mxu0 0.0
        %1920 = vmatpush1.msra.mxu0 %v1902
        %1921 = vmatprep.subr.mxu0 0.0
        %1922 = vmatpush1.msra.mxu0 %v1903
        %1923 = vmatprep.subr.mxu0 0.0
        %1924 = vmatpush1.msra.mxu0 %v1904
        %1925 = vmatprep.subr.mxu0 0.0
        %1926 = vmatpush1.msra.mxu0 %v1905
        %1927 = vmatprep.subr.mxu0 0.0
        %1928 = vmatpush1.msra.mxu0 0.0
        %1929 = vmatprep.subr.mxu0 0.0
        %1930 = vmatpush1.msra.mxu0 0.0
        %1931 = vmatprep.subr.mxu0 0.0
        %1932 = vmatpush1.msra.mxu0 0.0
        %1933 = vmatprep.subr.mxu0 0.0
        %1934 = vmatpush1.msra.mxu0 0.0
        %1935 = vmatprep.subr.mxu0 0.0
        %1936 = vmatpush1.msra.mxu0 0.0
        %1937 = vmatprep.subr.mxu0 0.0
        %1938 = vmatpush1.msra.mxu0 0.0
        %1939 = vmatprep.subr.mxu0 0.0
        %1940 = vmatpush1.msra.mxu0 0.0
        %1941 = vmatprep.subr.mxu0 0.0
        %1942 = vmatpush1.msra.mxu0 0.0
        %1943 = vmatprep.subr.mxu0 0.0
        %1944 = vmatpush1.msra.mxu0 0.0
        %1945 = vmatprep.subr.mxu0 0.0
        %1946 = vmatpush1.msra.mxu0 0.0
        %1947 = vmatprep.subr.mxu0 0.0
        %1948 = vmatpush1.msra.mxu0 0.0
        %1949 = vmatprep.subr.mxu0 0.0
        %1950 = vmatpush1.msra.mxu0 0.0
        %1951 = vmatprep.subr.mxu0 0.0
        %1952 = vmatpush1.msra.mxu0 0.0
        %1953 = vmatprep.subr.mxu0 0.0
        %1954 = vmatpush1.msra.mxu0 0.0
        %1955 = vmatprep.subr.mxu0 0.0
        %1956 = vmatpush1.msra.mxu0 0.0
        %1957 = vmatprep.subr.mxu0 0.0
        %1958 = vmatpush1.msra.mxu0 0.0
        %1959 = vmatprep.subr.mxu0 0.0
        %1960 = vmatpush1.msra.mxu0 0.0
        %1961 = vmatprep.subr.mxu0 0.0
        %1962 = vmatpush1.msra.mxu0 0.0
        %1963 = vmatprep.subr.mxu0 0.0
        %1964 = vmatpush1.msra.mxu0 0.0
        %1965 = vmatprep.subr.mxu0 0.0
        %1966 = vmatpush1.msra.mxu0 0.0
        %1967 = vmatprep.subr.mxu0 0.0
        %1968 = vmatpush1.msra.mxu0 0.0
        %1969 = vmatprep.subr.mxu0 0.0
        %1970 = vmatpush1.msra.mxu0 0.0
        %1971 = vmatprep.subr.mxu0 0.0
        %1972 = vmatpush1.msra.mxu0 0.0
        %1973 = vmatprep.subr.mxu0 0.0
        %1974 = vmatpush1.msra.mxu0 0.0
        %1975 = vmatprep.subr.mxu0 0.0
        %1976 = vmatpush1.msra.mxu0 0.0
        %1977 = vmatprep.subr.mxu0 0.0
        %1978 = vmatpush1.msra.mxu0 0.0
        %1979 = vmatprep.subr.mxu0 0.0
        %1980 = vmatpush1.msra.mxu0 0.0
        %1981 = vmatprep.subr.mxu0 0.0
        %1982 = vmatpush1.msra.mxu0 0.0
        %1983 = vmatprep.mubr.f32.mxu0 0.0
        %1984 = vmatmul.mubr.f32.gmra.mrb[0].mxu0 %v1914
        %v1985 = vpop.f32.mrb[0].mxu0
        %v1986 = vadd.f32 %v1911, %v1985
        %v1987 = vpop.f32.mrb[0].mxu0
        %1988 = vmatprep.mubr.f32.mxu0 0.0
        %1989 = vmatmul.mubr.f32.gmra.mrb[0].mxu0 %v1917
        %v1990 = vpop.f32.mrb[0].mxu0
        %v1991 = vadd.f32 %v1911, %v1990
        %v1992 = vpop.f32.mrb[0].mxu0
        %1993 = vdwg.mxu0
        %v1994 = vmax.f32 %v1986, 0.0
        %v1995 = vmax.f32 %v1991, 0.0
        %v1996 = vld [vmem:[%s9] sm:$0x1]
        %v1998 = vlaneseq
        %v1999 = vshrl.u32 %v1998, 7
        %v2000 = vsub.s32 0, %v1999
        %v2001 = vrot.slane %v1996, %v2000
        %v2003 = vmul.f32 %v1994, %v2001
        %v2004 = vmul.f32 %v1995, %v2001
        %v2005 = vsel %vm737, %v2003, 0.0
        %2006 = vadd.xlane.f32.xlu0 %v2005
        %v2007 = vpop.xlane.xlu0 %2006
        %v2008 = vsel %vm737, %v2004, 0.0
        %2009 = vadd.xlane.f32.xlu0 %v2008
        %v2010 = vpop.xlane.xlu0 %2009
        %v2011 = vld [vmem:[#allocation2] sm:$0x1]
        %v2013 = vlaneseq
        %v2014 = vshrl.u32 %v2013, 7
        %v2015 = vsub.s32 0, %v2014
        %v2016 = vrot.slane %v2011, %v2015
        %v2018 = vadd.f32 %v2007, %v2016
        %v2019 = vadd.f32 %v2010, %v2016
        %vm2020 = vcmask 7168
        %2021 = vst.msk [vmem:[%s488] sm:$0xff] %vm2020, %v2018
        %2022 = vst.msk [vmem:[%s488 + $0x8] sm:$0xff] %vm2020, %v2019
        %p2023 = scmp.lt.s32.totalorder %s29, 1
        %s2024 = scalar_select %p2023, %s29, 1
        %s2025 = smul.addr %s2024, 2
        %s2026 = smul.addr %s2025, 8
        %s2027 = scalar_lea.vmem %s11, %s2026
        // Predicated region
        $region81: #{tpu_custom_call.1} parent=63 // pred_check
          %p2028 = pneg %p293
        $region82: #{tpu_custom_call.1} parent=63 // pred_check_branch
          %2030 = sbr.rel (%p2028) target = $region84
        $region83: #{tpu_custom_call.1} parent=63 // pred_region
          _
        $region84: #{tpu_custom_call.1} parent=63 // pred_fallthru
          _
      $region64: #{tpu_custom_call.1} parent=5 // pred_fallthru
        _
      %p2031 = scmp.le.s32.totalorder 2, %s24
      // Predicated region
      $region85: #{tpu_custom_call.1} parent=5 // pred_check
        %p2032 = pneg %p2031
      $region86: #{tpu_custom_call.1} parent=5 // pred_check_branch
        %2034 = sbr.rel (%p2032) target = $region88
      $region87: #{tpu_custom_call.1} parent=5 // pred_region
        %s2035 = ssub.s32 %s24, 2
        // Predicated region
        $region89: #{tpu_custom_call.1} parent=87 // pred_check
          %p2036 = pneg %p299
        $region90: #{tpu_custom_call.1} parent=87 // pred_check_branch
          %2038 = sbr.rel (%p2036) target = $region92
        $region91: #{tpu_custom_call.1} parent=87 // pred_region
          %p2039 = scmp.lt.s32.totalorder %s30, 1
          %s2040 = scalar_select %p2039, %s30, 1
          %s2041 = smul.addr %s2040, 2
          %s2042 = smul.addr %s2041, 8
          %s2043 = scalar_lea.vmem %s11, %s2042
        $region92: #{tpu_custom_call.1} parent=87 // pred_fallthru
          _
      $region88: #{tpu_custom_call.1} parent=5 // pred_fallthru
        _
    $region6: #{tpu_custom_call.1} parent=1 // loop_footer
      %s28 = sadd.s32 1, %s24
    $region7: #{tpu_custom_call.1} parent=1 // loop_footer_branch
      %23 = sbr.rel target = $region3
    $region8: #{tpu_custom_call.1} parent=1 // loop_exit
      _
    %2044 = vsyncpa [#allocation4], 1
    %s2045 = scalar_lea.sflag [#allocation4], 1
    %2046 = vsyncpa %s2045, 1
    %2047 = vsyncpa [#allocation6], 1
    %2048 = vsyncpa [#allocation9], 1

</llo_original>
